<compile_context>
chip_gen: v6e
topology: v6e:2x2x1
jax: 0.10.0
libtpu: 0.0.40
codegen_flags: <defaults>
</compile_context>

<pallas_src>
import functools

import jax
import jax.numpy as jnp
from jax import lax
from jax.experimental import pallas as pl
from jax.experimental.pallas import tpu as pltpu

F32 = jnp.float32
BF16 = jnp.bfloat16


# ----------------------------------------------------------------------------
# Kernel
# ----------------------------------------------------------------------------
def _self_attention_kernel(x_ref, wqv_ref, bqv_ref, wk_ref, bk_ref, g_ref,
                           o_ref, q_sc, v_sc, *, dq, tj, proj_chunk, n_valid):
    j = pl.program_id(1)
    n_pad = q_sc.shape[1]                       # padded sequence length (lanes)

    # ---- j == 0: fused Q/V projection for the whole sequence, lane-chunked ----
    @pl.when(j == 0)
    def _():
        n_chunks = n_pad // proj_chunk

        def proj_body(c, carry):
            cs = pl.multiple_of(c * proj_chunk, proj_chunk)
            xc = x_ref[0, :, pl.ds(cs, proj_chunk)].astype(BF16)      # (C, chunk)
            qv = jnp.dot(wqv_ref[...], xc,                            # bf16 MXU
                         preferred_element_type=jnp.float32)          # (dq+C, chunk)
            qv = qv + bqv_ref[...]
            q_sc[:, pl.ds(cs, proj_chunk)] = qv[:dq, :].astype(BF16)
            v_sc[:, pl.ds(cs, proj_chunk)] = qv[dq:, :].astype(BF16)
            return carry

        lax.fori_loop(0, n_chunks, proj_body, 0, unroll=n_chunks <= 4)

    # ---- per key tile: columns [jj, jj+tj) ----
    jj = pl.multiple_of(j * tj, tj)
    xk = x_ref[0, :, pl.ds(jj, tj)]                                   # (C, tj) f32
    k_blk = (jnp.dot(wk_ref[...], xk.astype(BF16),
                     preferred_element_type=jnp.float32)
             + bk_ref[...]).astype(BF16)                              # (dq, tj)

    # s[n, r] = <q_n, k_{jj+r}>  — contract the dq sublane axis of both operands.
    s = lax.dot_general(q_sc[...], k_blk,
                        dimension_numbers=(((0,), (0,)), ((), ())),
                        preferred_element_type=jnp.float32)           # (n_pad, tj)

    if n_valid < n_pad:                         # mask padded query rows (softmax axis)
        row = lax.broadcasted_iota(jnp.int32, s.shape, 0)
        s = jnp.where(row < n_valid, s, -jnp.inf)

    s = s - jnp.max(s, axis=0, keepdims=True)                         # column max
    e = jnp.exp(s)
    denom = jnp.sum(e, axis=0, keepdims=True)                         # (1, tj) f32

    av = jnp.dot(v_sc[...], e.astype(BF16),
                 preferred_element_type=jnp.float32)                  # (C, tj) f32
    out = av * pl.reciprocal(denom, approx=False)                     # deferred norm
    o_ref[0] = g_ref[0] * out + xk                                    # residual (f32)


# ----------------------------------------------------------------------------
# Wrapper
# ----------------------------------------------------------------------------
def self_attention(x_nchw, params):
    """x_nchw: (B, C, H, W) float32 -- same layout/semantics as the PyTorch module."""
    B, C, H, W = x_nchw.shape
    N = H * W
    dq = params["wq"].shape[0]
    F_qv = dq + C

    # (B, C, H, W) -> (B, C, N) is a free view; pad N to a multiple of 128.
    xf = x_nchw.reshape(B, C, N).astype(F32)
    Np = ((N + 127) // 128) * 128
    if Np != N:
        xf = jnp.pad(xf, ((0, 0), (0, 0), (0, Np - N)))

    TJ = 256 if Np % 256 == 0 else 128                 # key-column tile
    PROJ = 512 if Np % 512 == 0 else (256 if Np % 256 == 0 else 128)

    # Fused [Wq; Wv] (sublane-stacked, conv-style (Cout, Cin)); K handled per step.
    w_qv = jnp.concatenate([params["wq"], params["wv"]], axis=0).astype(BF16)   # (dq+C, C)
    b_qv = jnp.concatenate([params["bq"], params["bv"]])[:, None].astype(F32)   # (dq+C, 1)
    w_k = params["wk"].astype(BF16)                                             # (dq, C)
    b_k = params["bk"][:, None].astype(F32)                                     # (dq, 1)
    gamma = jnp.asarray(params["gamma"], F32).reshape(1,)                       # SMEM scalar

    # Rough VMEM budget (bytes) -> compiler limit, clamped to [32, 64] MiB.
    est = (2 * C * Np * 4                    # x block (double-buffered)
           + F_qv * C * 2 + dq * C * 2       # weights (single-buffered)
           + (F_qv + dq) * 128 * 4           # biases (lane padded)
           + 2 * C * TJ * 4                  # out block (double-buffered)
           + dq * Np * 2 + C * Np * 2        # q / v scratch
           + Np * TJ * 6                     # s (f32) + e (bf16) temporaries
           + F_qv * PROJ * 6                 # projection chunk temporaries
           + 2 * C * TJ * 4)                 # av / residual temporaries
    vmem_limit = int(min(64 * 2**20, max(32 * 2**20, est * 1.4)))

    out = pl.pallas_call(
        functools.partial(_self_attention_kernel, dq=dq, tj=TJ,
                          proj_chunk=PROJ, n_valid=N),
        out_shape=jax.ShapeDtypeStruct((B, C, Np), F32),
        grid=(B, Np // TJ),
        in_specs=[
            pl.BlockSpec((1, C, Np), lambda b, j: (b, 0, 0)),          # full x per batch
            pl.BlockSpec((F_qv, C), lambda b, j: (0, 0),
                         pipeline_mode=pl.Buffered(1)),                # fused QV weight
            pl.BlockSpec((F_qv, 1), lambda b, j: (0, 0),
                         pipeline_mode=pl.Buffered(1)),                # fused QV bias
            pl.BlockSpec((dq, C), lambda b, j: (0, 0),
                         pipeline_mode=pl.Buffered(1)),                # K weight
            pl.BlockSpec((dq, 1), lambda b, j: (0, 0),
                         pipeline_mode=pl.Buffered(1)),                # K bias
            pl.BlockSpec(memory_space=pltpu.MemorySpace.SMEM),         # gamma scalar
        ],
        out_specs=pl.BlockSpec((1, C, TJ), lambda b, j: (b, 0, j)),
        scratch_shapes=[
            pltpu.VMEM((dq, Np), BF16),                                # q  (dq, N)
            pltpu.VMEM((C, Np), BF16),                                 # v  (C, N)
        ],
        compiler_params=pltpu.CompilerParams(
            dimension_semantics=("parallel", "arbitrary"),
            vmem_limit_bytes=vmem_limit),
    )(xf, w_qv, b_qv, w_k, b_k, gamma)

    if Np != N:
        out = out[:, :, :N]
    return out.reshape(B, C, H, W)


# ----------------------------------------------------------------------------
# Parameter construction (spectral_init of the three 1x1 convs) -- plain JAX glue
# ----------------------------------------------------------------------------
def _kaiming_uniform(key, shape, fan_in):
    # kaiming_uniform_(w, a=1): bound = sqrt(2/(1+1)) * sqrt(3/fan_in) = sqrt(3/fan_in)
    bound = (3.0 / fan_in) ** 0.5
    return jax.random.uniform(key, shape, minval=-bound, maxval=bound, dtype=F32)


def _spectral_norm_weight(w, u):
    # One power-iteration step, as in SpectralNorm.compute_weight.
    w_mat = w.reshape(w.shape[0], -1)
    v = w_mat.T @ u
    v = v / jnp.linalg.norm(v)
    u2 = w_mat @ v
    u2 = u2 / jnp.linalg.norm(u2)
    sigma = u2 @ (w_mat @ v)
    return w / sigma


def init_self_attention_params(key, in_channel):
    dq = in_channel // 8
    ks = jax.random.split(key, 6)

    def sn_conv1x1(kw, ku, cout, cin):
        w = _kaiming_uniform(kw, (cout, cin, 1), cin)       # Conv1d weight, fan_in = cin
        u = jax.random.normal(ku, (cout,), F32)
        w = _spectral_norm_weight(w, u)
        return w[:, :, 0]                                   # (Cout, Cin)

    # TODO(synk): the SpectralNorm u-buffer update (a training-time side effect)
    # is not carried across calls; only the sigma-normalized weight is used.
    return {
        "wq": sn_conv1x1(ks[0], ks[1], dq, in_channel),
        "wk": sn_conv1x1(ks[2], ks[3], dq, in_channel),
        "wv": sn_conv1x1(ks[4], ks[5], in_channel, in_channel),
        "bq": jnp.zeros((dq,), F32),                        # spectral_init zeroes biases
        "bk": jnp.zeros((dq,), F32),
        "bv": jnp.zeros((in_channel,), F32),
        "gamma": jnp.float32(0.0),                          # nn.Parameter(torch.tensor(0.))
    }


# ----------------------------------------------------------------------------
# Pure-JAX reference (mirrors the PyTorch forward exactly, f32)
# ----------------------------------------------------------------------------
def self_attention_ref(x_nchw, params):
    B, C, H, W = x_nchw.shape
    N = H * W
    xf = x_nchw.reshape(B, C, N)
    q = jnp.einsum('dc,bcn->bnd', params["wq"], xf) + params["bq"][None, None, :]
    k = jnp.einsum('dc,bcn->bdn', params["wk"], xf) + params["bk"][None, :, None]
    v = jnp.einsum('ec,bcn->ben', params["wv"], xf) + params["bv"][None, :, None]
    qk = jnp.einsum('bnd,bdm->bnm', q, k)                   # (B, N, N)
    attn = jax.nn.softmax(qk, axis=1)                       # softmax over dim 1
    out = jnp.einsum('bcn,bnm->bcm', v, attn).reshape(B, C, H, W)
    return params["gamma"] * out + x_nchw


# ----------------------------------------------------------------------------
if __name__ == "__main__":
    key = jax.random.PRNGKey(0)
    k_p1, k_x1, k_p2, k_x2 = jax.random.split(key, 4)

    # Test 1: aligned sequence length (N = 256).
    B, C, H, W = 2, 128, 16, 16
    params = init_self_attention_params(k_p1, in_channel=C)
    # Torch init has gamma == 0 (attention branch multiplied out); use a non-zero
    # gamma so the test actually exercises the attention path.
    params["gamma"] = jnp.float32(1.0)
    x = jax.random.normal(k_x1, (B, C, H, W), dtype=F32)

    out = jax.block_until_ready(self_attention(x, params))
    assert out.shape == (B, C, H, W), out.shape
    assert bool(jnp.isfinite(out).all())
    ref = self_attention_ref(x, params)
    err = float(jnp.max(jnp.abs(out - ref)))
    # Loose tolerance: kernel feeds the MXU with bf16 operands (f32 accumulation).
    assert err < 0.25, f"test1 max abs error vs f32 reference: {err}"

    # Test 2: ragged sequence length (N = 100 -> padded to 128, masked softmax rows).
    B2, C2, H2, W2 = 1, 64, 10, 10
    params2 = init_self_attention_params(k_p2, in_channel=C2)
    params2["gamma"] = jnp.float32(1.0)
    x2 = jax.random.normal(k_x2, (B2, C2, H2, W2), dtype=F32)

    out2 = jax.block_until_ready(self_attention(x2, params2))
    assert out2.shape == (B2, C2, H2, W2), out2.shape
    assert bool(jnp.isfinite(out2).all())
    ref2 = self_attention_ref(x2, params2)
    err2 = float(jnp.max(jnp.abs(out2 - ref2)))
    assert err2 < 0.25, f"test2 max abs error vs f32 reference: {err2}"

    print("KERNEL_OK")
</pallas_src>

<mosaic_0001>
module attributes {stable_mosaic.version = 11 : i64} {
  func.func @_self_attention_kernel(%arg0: i32, %arg1: i32, %arg2: memref<1x128x256xf32, #tpu.memory_space<vmem>>, %arg3: memref<144x128xbf16, #tpu.memory_space<vmem>>, %arg4: memref<144x1xf32, #tpu.memory_space<vmem>>, %arg5: memref<16x128xbf16, #tpu.memory_space<vmem>>, %arg6: memref<16x1xf32, #tpu.memory_space<vmem>>, %arg7: memref<1xf32, #tpu.memory_space<smem>>, %arg8: memref<1x128x256xf32, #tpu.memory_space<vmem>>, %arg9: memref<16x256xbf16, #tpu.memory_space<vmem>>, %arg10: memref<128x256xbf16, #tpu.memory_space<vmem>>) attributes {dimension_semantics = [#tpu.dimension_semantics<parallel>, #tpu.dimension_semantics<arbitrary>], iteration_bounds = array<i64: 2, 1>, scalar_prefetch = 0 : i64, scratch_operands = 2 : i64, tpu.core_type = #tpu.core_type<tc>, window_params = [{transform_indices = @transform_0, window_bounds = array<i64: 1, 128, 256>}, {pipeline_mode = #tpu.pipeline_mode<synchronous>, transform_indices = @transform_1, window_bounds = array<i64: 144, 128>}, {pipeline_mode = #tpu.pipeline_mode<synchronous>, transform_indices = @transform_2, window_bounds = array<i64: 144, 1>}, {pipeline_mode = #tpu.pipeline_mode<synchronous>, transform_indices = @transform_3, window_bounds = array<i64: 16, 128>}, {pipeline_mode = #tpu.pipeline_mode<synchronous>, transform_indices = @transform_4, window_bounds = array<i64: 16, 1>}, {transform_indices = @transform_5, window_bounds = array<i64: 1>}, {transform_indices = @transform_6, window_bounds = array<i64: 1, 128, 256>}]} {
    %c0_i32 = arith.constant 0 : i32
    %0 = arith.cmpi eq, %arg1, %c0_i32 : i32
    %1 = arith.extui %0 : i1 to i32
    %c0_i32_0 = arith.constant 0 : i32
    %2 = arith.cmpi ne, %1, %c0_i32_0 : i32
    scf.if %2 {
      %c0_i32_18 = arith.constant 0 : i32
      %c256_i32_19 = arith.constant 256 : i32
      %37 = arith.muli %c0_i32_18, %c256_i32_19 : i32
      %38 = tpu.assume_multiple %37, 256 : i32
      %c0_20 = arith.constant 0 : index
      %c0_21 = arith.constant 0 : index
      %39 = arith.index_cast %38 : i32 to index
      %40 = vector.load %arg2[%c0_20, %c0_21, %39] : memref<1x128x256xf32, #tpu.memory_space<vmem>>, vector<1x128x256xf32>
      %41 = vector.shape_cast %40 : vector<1x128x256xf32> to vector<128x256xf32>
      %42 = arith.truncf %41 : vector<128x256xf32> to vector<128x256xbf16>
      %c0_22 = arith.constant 0 : index
      %c0_23 = arith.constant 0 : index
      %43 = vector.load %arg3[%c0_22, %c0_23] : memref<144x128xbf16, #tpu.memory_space<vmem>>, vector<144x128xbf16>
      %cst_24 = arith.constant dense<0.000000e+00> : vector<144x256xf32>
      %44 = tpu.matmul %43, %42, %cst_24 {dimension_numbers = #tpu.dot_dimension_numbers<[1], [0], [0], [1], [0, 0, 1, 1], [], []>} : vector<144x128xbf16>, vector<128x256xbf16>, vector<144x256xf32> -> vector<144x256xf32>
      %c0_25 = arith.constant 0 : index
      %c0_26 = arith.constant 0 : index
      %45 = vector.load %arg4[%c0_25, %c0_26] : memref<144x1xf32, #tpu.memory_space<vmem>>, vector<144x1xf32>
      %46 = vector.broadcast %45 : vector<144x1xf32> to vector<144x256xf32>
      %47 = arith.addf %44, %46 : vector<144x256xf32>
      %48 = vector.extract_strided_slice %47 {offsets = [0, 0], sizes = [16, 256], strides = [1, 1]} : vector<144x256xf32> to vector<16x256xf32>
      %49 = arith.truncf %48 : vector<16x256xf32> to vector<16x256xbf16>
      %c0_27 = arith.constant 0 : index
      %50 = arith.index_cast %38 : i32 to index
      %51 = vector.load %arg9[%c0_27, %50] : memref<16x256xbf16, #tpu.memory_space<vmem>>, vector<16x256xbf16>
      tpu.vector_store %arg9[%c0_27, %50], %49 {strides = array<i32>} : memref<16x256xbf16, #tpu.memory_space<vmem>>, vector<16x256xbf16>,
      %52 = vector.extract_strided_slice %47 {offsets = [16, 0], sizes = [128, 256], strides = [1, 1]} : vector<144x256xf32> to vector<128x256xf32>
      %53 = arith.truncf %52 : vector<128x256xf32> to vector<128x256xbf16>
      %c0_28 = arith.constant 0 : index
      %54 = arith.index_cast %38 : i32 to index
      %55 = vector.load %arg10[%c0_28, %54] : memref<128x256xbf16, #tpu.memory_space<vmem>>, vector<128x256xbf16>
      tpu.vector_store %arg10[%c0_28, %54], %53 {strides = array<i32>} : memref<128x256xbf16, #tpu.memory_space<vmem>>, vector<128x256xbf16>,
      %c1_i32 = arith.constant 1 : i32
    } else {
    }
    %c256_i32 = arith.constant 256 : i32
    %3 = arith.muli %arg1, %c256_i32 : i32
    %4 = tpu.assume_multiple %3, 256 : i32
    %c0 = arith.constant 0 : index
    %c0_1 = arith.constant 0 : index
    %5 = arith.index_cast %4 : i32 to index
    %6 = vector.load %arg2[%c0, %c0_1, %5] : memref<1x128x256xf32, #tpu.memory_space<vmem>>, vector<1x128x256xf32>
    %7 = vector.shape_cast %6 : vector<1x128x256xf32> to vector<128x256xf32>
    %c0_2 = arith.constant 0 : index
    %c0_3 = arith.constant 0 : index
    %8 = vector.load %arg5[%c0_2, %c0_3] : memref<16x128xbf16, #tpu.memory_space<vmem>>, vector<16x128xbf16>
    %9 = arith.truncf %7 : vector<128x256xf32> to vector<128x256xbf16>
    %cst = arith.constant dense<0.000000e+00> : vector<16x256xf32>
    %10 = tpu.matmul %8, %9, %cst {dimension_numbers = #tpu.dot_dimension_numbers<[1], [0], [0], [1], [0, 0, 1, 1], [], []>} : vector<16x128xbf16>, vector<128x256xbf16>, vector<16x256xf32> -> vector<16x256xf32>
    %c0_4 = arith.constant 0 : index
    %c0_5 = arith.constant 0 : index
    %11 = vector.load %arg6[%c0_4, %c0_5] : memref<16x1xf32, #tpu.memory_space<vmem>>, vector<16x1xf32>
    %12 = vector.broadcast %11 : vector<16x1xf32> to vector<16x256xf32>
    %13 = arith.addf %10, %12 : vector<16x256xf32>
    %14 = arith.truncf %13 : vector<16x256xf32> to vector<16x256xbf16>
    %c0_6 = arith.constant 0 : index
    %c0_7 = arith.constant 0 : index
    %15 = vector.load %arg9[%c0_6, %c0_7] : memref<16x256xbf16, #tpu.memory_space<vmem>>, vector<16x256xbf16>
    %cst_8 = arith.constant dense<0.000000e+00> : vector<256x256xf32>
    %16 = tpu.matmul %15, %14, %cst_8 {dimension_numbers = #tpu.dot_dimension_numbers<[0], [0], [1], [1], [0, 1, 1, 1], [], []>} : vector<16x256xbf16>, vector<16x256xbf16>, vector<256x256xf32> -> vector<256x256xf32>
    %cst_9 = arith.constant dense<0xFF800000> : vector<256xf32>
    %17 = vector.multi_reduction <maximumf>, %16, %cst_9 [0] : vector<256x256xf32> to vector<256xf32>
    %18 = vector.shape_cast %17 : vector<256xf32> to vector<1x256xf32>
    %19 = vector.broadcast %18 : vector<1x256xf32> to vector<256x256xf32>
    %20 = arith.subf %16, %19 : vector<256x256xf32>
    %21 = math.exp %20 : vector<256x256xf32>
    %cst_10 = arith.constant dense<0.000000e+00> : vector<256xf32>
    %22 = vector.multi_reduction <add>, %21, %cst_10 [0] : vector<256x256xf32> to vector<256xf32>
    %23 = vector.shape_cast %22 : vector<256xf32> to vector<1x256xf32>
    %c0_11 = arith.constant 0 : index
    %c0_12 = arith.constant 0 : index
    %24 = vector.load %arg10[%c0_11, %c0_12] : memref<128x256xbf16, #tpu.memory_space<vmem>>, vector<128x256xbf16>
    %25 = arith.truncf %21 : vector<256x256xf32> to vector<256x256xbf16>
    %cst_13 = arith.constant dense<0.000000e+00> : vector<128x256xf32>
    %26 = tpu.matmul %24, %25, %cst_13 {dimension_numbers = #tpu.dot_dimension_numbers<[1], [0], [0], [1], [0, 0, 1, 1], [], []>} : vector<128x256xbf16>, vector<256x256xbf16>, vector<128x256xf32> -> vector<128x256xf32>
    %27 = tpu.reciprocal %23 : vector<1x256xf32> -> vector<1x256xf32>
    %28 = vector.broadcast %27 : vector<1x256xf32> to vector<128x256xf32>
    %29 = arith.mulf %26, %28 : vector<128x256xf32>
    %c0_14 = arith.constant 0 : index
    %30 = memref.load %arg7[%c0_14] : memref<1xf32, #tpu.memory_space<smem>>
    %31 = vector.broadcast %30 : f32 to vector<128x256xf32>
    %32 = arith.mulf %31, %29 : vector<128x256xf32>
    %33 = arith.addf %32, %7 : vector<128x256xf32>
    %c0_15 = arith.constant 0 : index
    %c0_16 = arith.constant 0 : index
    %c0_17 = arith.constant 0 : index
    %34 = vector.load %arg8[%c0_15, %c0_16, %c0_17] : memref<1x128x256xf32, #tpu.memory_space<vmem>>, vector<1x128x256xf32>
    %35 = vector.shape_cast %34 : vector<1x128x256xf32> to vector<128x256xf32>
    %36 = vector.shape_cast %33 : vector<128x256xf32> to vector<1x128x256xf32>
    tpu.vector_store %arg8[%c0_15, %c0_16, %c0_17], %36 {strides = array<i32>} : memref<1x128x256xf32, #tpu.memory_space<vmem>>, vector<1x128x256xf32>,
    return
  }
  func.func @transform_0(%arg0: i32, %arg1: i32) -> (i32, i32, i32) {
    %c0_i32 = arith.constant 0 : i32
    %c0_i32_0 = arith.constant 0 : i32
    %c0_i32_1 = arith.constant 0 : i32
    return %arg0, %c0_i32, %c0_i32_0 : i32, i32, i32
  }
  func.func @transform_1(%arg0: i32, %arg1: i32) -> (i32, i32) {
    %c0_i32 = arith.constant 0 : i32
    %c0_i32_0 = arith.constant 0 : i32
    %c0_i32_1 = arith.constant 0 : i32
    return %c0_i32, %c0_i32_0 : i32, i32
  }
  func.func @transform_2(%arg0: i32, %arg1: i32) -> (i32, i32) {
    %c0_i32 = arith.constant 0 : i32
    %c0_i32_0 = arith.constant 0 : i32
    %c0_i32_1 = arith.constant 0 : i32
    return %c0_i32, %c0_i32_0 : i32, i32
  }
  func.func @transform_3(%arg0: i32, %arg1: i32) -> (i32, i32) {
    %c0_i32 = arith.constant 0 : i32
    %c0_i32_0 = arith.constant 0 : i32
    %c0_i32_1 = arith.constant 0 : i32
    return %c0_i32, %c0_i32_0 : i32, i32
  }
  func.func @transform_4(%arg0: i32, %arg1: i32) -> (i32, i32) {
    %c0_i32 = arith.constant 0 : i32
    %c0_i32_0 = arith.constant 0 : i32
    %c0_i32_1 = arith.constant 0 : i32
    return %c0_i32, %c0_i32_0 : i32, i32
  }
  func.func @transform_5(%arg0: i32, %arg1: i32) -> i32 {
    %c0_i32 = arith.constant 0 : i32
    %c0_i32_0 = arith.constant 0 : i32
    return %c0_i32 : i32
  }
  func.func @transform_6(%arg0: i32, %arg1: i32) -> (i32, i32, i32) {
    %c0_i32 = arith.constant 0 : i32
    %c0_i32_0 = arith.constant 0 : i32
    return %arg0, %c0_i32, %arg1 : i32, i32, i32
  }
}

</mosaic_0001>

<llo_original>
// kernel: tpu_custom_call.1
$region0: #{tpu_custom_call.1}
  #allocation0 [shape = 'u32[]', space=smem, size = 0x4, offset = 0x4, fixed_abs, tag = 'smem constant byte address 0x4 - core index']
  #allocation1 [shape = 'u32[144,128]{1,0:T(1,128)}', space=vmem, size = 0x12000, scoped, tag = 'internal scratch']
  #allocation2 [shape = 'bf16[16,256]{1,0:T(8,128)(2,1)}', space=vmem, size = 0x2000, scoped, tag = 'scratch operand']
  #allocation3 [shape = 'bf16[128,256]{1,0:T(8,128)(2,1)}', space=vmem, size = 0x10000, scoped, tag = 'scratch operand']
  #allocation4 [shape = 'f32[1]{0:T(128)S(6)}', space=smem, size = 0x200, scoped, tag = 'scoped memory for tpu_custom_call.1']
  %s0 = inlined_call_operand.hbm [shape: f32[2,128,256], index: 0, kind: input, shape index: {}]
  %s1 = inlined_call_operand.vmem [shape: bf16[144,128], index: 1, kind: input, shape index: {}]
  %s2 = inlined_call_operand.vmem [shape: f32[144,1], index: 2, kind: input, shape index: {}]
  %s3 = inlined_call_operand.vmem [shape: bf16[16,128], index: 3, kind: input, shape index: {}]
  %s4 = inlined_call_operand.vmem [shape: f32[16,1], index: 4, kind: input, shape index: {}]
  %s5 = inlined_call_operand.<no memory space> [shape: f32[1], index: 5, kind: input, shape index: {}]
  %s6 = inlined_call_operand.hbm [shape: f32[2,128,256], index: 6, kind: output, shape index: {}]
  %s7 = sld [smem:[#allocation0]]
  $region65: #{tpu_custom_call.1} parent=0
    _
  %s9 = ssub.s32 1, %s7
  %s10 = scalar_select 0, %s9, %s7
  %11 = sst [smem:[#allocation4]] %s5
  $region1: #{tpu_custom_call.1} parent=0
    #allocation5 [shape = 'u8[262144]{0}', space=vmem, size = 0x40000, scoped, tag = 'input window, operand 0']
    #allocation6 [shape = 's32[2]{0}', space=sflag, size = 0x8, scoped, tag = 'scoped memory for tpu_custom_call.1']
    #allocation7 [shape = 's32[2]{0}', space=sflag, size = 0x8, scoped, tag = 'scoped memory for tpu_custom_call.1']
    #allocation8 [shape = 'u8[262144]{0}', space=vmem, size = 0x40000, scoped, tag = 'output window, operand 0']
    %12 = vsyncpa [#allocation6], 0
    %s13 = scalar_lea.sflag [#allocation6], 1
    %14 = vsyncpa %s13, 0
    %15 = vsyncpa [#allocation7], 0
    %s16 = scalar_lea.sflag [#allocation7], 1
    %17 = vsyncpa %s16, 0
    loop: start=0, step=1, limit=4
    $region2: #{tpu_custom_call.1} parent=1 // loop_pre_header
      _
    $region3: #{tpu_custom_call.1} parent=1 // loop_header
      %s19 = sphi 0, %s23
      %p20 = scmp.ge.s32.totalorder %s19, 4
      %s26 = sphi 0, %s38
      %s27 = sphi 0, %s34
      %s28 = sphi 0, %s26
      %s29 = sphi 0, %s27
      %s30 = sphi 0, %s28
      %s31 = sphi 0, %s29
      %s41 = sphi 0, %s43
      %s44 = sphi 0, %s41
      %s45 = sphi 0, %s44
      %s61 = sphi 0, %s45
      %s65 = sphi 0, %s65
      %s67 = sphi 0, %s65
      %s68 = sphi 0, %s67
      %s82 = sphi 0, %s68
      %s86 = sphi 0, %s86
      %s88 = sphi 0, %s86
      %s89 = sphi 0, %s88
      %s103 = sphi 0, %s89
      %s107 = sphi 0, %s107
      %s109 = sphi 0, %s107
      %s110 = sphi 0, %s109
      %s124 = sphi 0, %s110
      %s128 = sphi 0, %s128
      %s130 = sphi 0, %s128
      %s131 = sphi 0, %s130
      %s145 = sphi 0, %s131
      %s149 = sphi 0, %s149
      %s151 = sphi 0, %s149
      %s152 = sphi 0, %s151
      %s166 = sphi 0, %s152
      %s174 = sphi 0, %s176
      %s177 = sphi 0, %s174
      %s178 = sphi 0, %s177
      %s194 = sphi 0, %s178
    $region4: #{tpu_custom_call.1} parent=1 // loop_header_branch
      %22 = sbr.rel (%p20) target = $region8
    $region5: #{tpu_custom_call.1} parent=1 // loop_body
      %s24 = ssub.s32 %s19, 1
      %s25 = ssub.s32 %s19, 2
      %s32 = sadd.s32 1, %s27
      %p33 = scmp.ge.s32.totalorder %s32, 1
      %s34 = scalar_select %p33, 0, %s32
      %s35 = sadd.s32 1, %s26
      %s36 = scalar_select %p33, %s35, %s26
      %p37 = scmp.ge.s32.totalorder %s36, 2
      %s38 = scalar_select %p37, 0, %s36
      %s39 = ssub.s32 %s26, %s38
      %p40 = scmp.eq.s32.totalorder %s39, 0
      %s42 = sadd.s32 %s41, 1
      %s43 = scalar_select %p40, %s41, %s42
      %p46 = pneg %p40
      %p47 = scmp.eq.s32.totalorder %s19, 1
      %p48 = por %p46, %p47
      %p49 = scmp.ne.s32.totalorder %s41, %s44
      %p50 = scmp.eq.s32.totalorder %s19, 0
      %p51 = por %p49, %p50
      %p52 = scmp.ne.s32.totalorder %s41, %s44
      %p53 = scmp.eq.s32.totalorder %s24, 1
      %p54 = por %p52, %p53
      %p55 = scmp.ne.s32.totalorder %s44, %s45
      %p56 = scmp.eq.s32.totalorder %s24, 0
      %p57 = por %p55, %p56
      %p58 = scmp.ne.s32.totalorder %s44, %s45
      %p59 = scmp.eq.s32.totalorder %s25, 1
      %p60 = por %p58, %p59
      %p62 = scmp.ne.s32.totalorder %s45, %s61
      %p63 = scmp.eq.s32.totalorder %s25, 0
      %p64 = por %p62, %p63
      %s66 = sadd.s32 %s65, 1
      %p69 = scmp.eq.s32.totalorder %s19, 1
      %p70 = scmp.ne.s32.totalorder %s65, %s67
      %p71 = scmp.eq.s32.totalorder %s19, 0
      %p72 = por %p70, %p71
      %p73 = scmp.ne.s32.totalorder %s65, %s67
      %p74 = scmp.eq.s32.totalorder %s24, 1
      %p75 = por %p73, %p74
      %p76 = scmp.ne.s32.totalorder %s67, %s68
      %p77 = scmp.eq.s32.totalorder %s24, 0
      %p78 = por %p76, %p77
      %p79 = scmp.ne.s32.totalorder %s67, %s68
      %p80 = scmp.eq.s32.totalorder %s25, 1
      %p81 = por %p79, %p80
      %p83 = scmp.ne.s32.totalorder %s68, %s82
      %p84 = scmp.eq.s32.totalorder %s25, 0
      %p85 = por %p83, %p84
      %s87 = sadd.s32 %s86, 1
      %p90 = scmp.eq.s32.totalorder %s19, 1
      %p91 = scmp.ne.s32.totalorder %s86, %s88
      %p92 = scmp.eq.s32.totalorder %s19, 0
      %p93 = por %p91, %p92
      %p94 = scmp.ne.s32.totalorder %s86, %s88
      %p95 = scmp.eq.s32.totalorder %s24, 1
      %p96 = por %p94, %p95
      %p97 = scmp.ne.s32.totalorder %s88, %s89
      %p98 = scmp.eq.s32.totalorder %s24, 0
      %p99 = por %p97, %p98
      %p100 = scmp.ne.s32.totalorder %s88, %s89
      %p101 = scmp.eq.s32.totalorder %s25, 1
      %p102 = por %p100, %p101
      %p104 = scmp.ne.s32.totalorder %s89, %s103
      %p105 = scmp.eq.s32.totalorder %s25, 0
      %p106 = por %p104, %p105
      %s108 = sadd.s32 %s107, 1
      %p111 = scmp.eq.s32.totalorder %s19, 1
      %p112 = scmp.ne.s32.totalorder %s107, %s109
      %p113 = scmp.eq.s32.totalorder %s19, 0
      %p114 = por %p112, %p113
      %p115 = scmp.ne.s32.totalorder %s107, %s109
      %p116 = scmp.eq.s32.totalorder %s24, 1
      %p117 = por %p115, %p116
      %p118 = scmp.ne.s32.totalorder %s109, %s110
      %p119 = scmp.eq.s32.totalorder %s24, 0
      %p120 = por %p118, %p119
      %p121 = scmp.ne.s32.totalorder %s109, %s110
      %p122 = scmp.eq.s32.totalorder %s25, 1
      %p123 = por %p121, %p122
      %p125 = scmp.ne.s32.totalorder %s110, %s124
      %p126 = scmp.eq.s32.totalorder %s25, 0
      %p127 = por %p125, %p126
      %s129 = sadd.s32 %s128, 1
      %p132 = scmp.eq.s32.totalorder %s19, 1
      %p133 = scmp.ne.s32.totalorder %s128, %s130
      %p134 = scmp.eq.s32.totalorder %s19, 0
      %p135 = por %p133, %p134
      %p136 = scmp.ne.s32.totalorder %s128, %s130
      %p137 = scmp.eq.s32.totalorder %s24, 1
      %p138 = por %p136, %p137
      %p139 = scmp.ne.s32.totalorder %s130, %s131
      %p140 = scmp.eq.s32.totalorder %s24, 0
      %p141 = por %p139, %p140
      %p142 = scmp.ne.s32.totalorder %s130, %s131
      %p143 = scmp.eq.s32.totalorder %s25, 1
      %p144 = por %p142, %p143
      %p146 = scmp.ne.s32.totalorder %s131, %s145
      %p147 = scmp.eq.s32.totalorder %s25, 0
      %p148 = por %p146, %p147
      %s150 = sadd.s32 %s149, 1
      %p153 = scmp.eq.s32.totalorder %s19, 1
      %p154 = scmp.ne.s32.totalorder %s149, %s151
      %p155 = scmp.eq.s32.totalorder %s19, 0
      %p156 = por %p154, %p155
      %p157 = scmp.ne.s32.totalorder %s149, %s151
      %p158 = scmp.eq.s32.totalorder %s24, 1
      %p159 = por %p157, %p158
      %p160 = scmp.ne.s32.totalorder %s151, %s152
      %p161 = scmp.eq.s32.totalorder %s24, 0
      %p162 = por %p160, %p161
      %p163 = scmp.ne.s32.totalorder %s151, %s152
      %p164 = scmp.eq.s32.totalorder %s25, 1
      %p165 = por %p163, %p164
      %p167 = scmp.ne.s32.totalorder %s152, %s166
      %p168 = scmp.eq.s32.totalorder %s25, 0
      %p169 = por %p167, %p168
      %s170 = ssub.s32 %s26, %s38
      %s171 = ssub.s32 %s27, %s34
      %s172 = sor.u32 %s170, %s171
      %p173 = scmp.eq.s32.totalorder %s172, 0
      %s175 = sadd.s32 %s174, 1
      %s176 = scalar_select %p173, %s174, %s175
      %p179 = pneg %p173
      %p180 = scmp.eq.s32.totalorder %s19, 1
      %p181 = por %p179, %p180
      %p182 = scmp.ne.s32.totalorder %s174, %s177
      %p183 = scmp.eq.s32.totalorder %s19, 0
      %p184 = por %p182, %p183
      %p185 = scmp.ne.s32.totalorder %s174, %s177
      %p186 = scmp.eq.s32.totalorder %s24, 1
      %p187 = por %p185, %p186
      %p188 = scmp.ne.s32.totalorder %s177, %s178
      %p189 = scmp.eq.s32.totalorder %s24, 0
      %p190 = por %p188, %p189
      %p191 = scmp.ne.s32.totalorder %s177, %s178
      %p192 = scmp.eq.s32.totalorder %s25, 1
      %p193 = por %p191, %p192
      %p195 = scmp.ne.s32.totalorder %s178, %s194
      %p196 = scmp.eq.s32.totalorder %s25, 0
      %p197 = por %p195, %p196
      %p198 = scmp.le.s32.totalorder 1, %s19
      %p199 = scmp.lt.s32.totalorder %s19, 3
      %p200 = pnand %p198, %p199
      %p201 = pneg %p200
      // Predicated region
      $region9: #{tpu_custom_call.1} parent=5 // pred_check
        _
      $region10: #{tpu_custom_call.1} parent=5 // pred_check_branch
        %203 = sbr.rel (%p200) target = $region12
      $region11: #{tpu_custom_call.1} parent=5 // pred_region
        %s204 = ssub.s32 %s19, 1
        // Predicated region
        $region13: #{tpu_custom_call.1} parent=11 // pred_check
          %p205 = pneg %p78
        $region14: #{tpu_custom_call.1} parent=11 // pred_check_branch
          %207 = sbr.rel (%p205) target = $region16
        $region15: #{tpu_custom_call.1} parent=11 // pred_region
          _
        $region16: #{tpu_custom_call.1} parent=11 // pred_fallthru
          _
        // Predicated region
        $region17: #{tpu_custom_call.1} parent=11 // pred_check
          %p208 = pneg %p99
        $region18: #{tpu_custom_call.1} parent=11 // pred_check_branch
          %210 = sbr.rel (%p208) target = $region20
        $region19: #{tpu_custom_call.1} parent=11 // pred_region
          _
        $region20: #{tpu_custom_call.1} parent=11 // pred_fallthru
          _
        // Predicated region
        $region21: #{tpu_custom_call.1} parent=11 // pred_check
          %p211 = pneg %p120
        $region22: #{tpu_custom_call.1} parent=11 // pred_check_branch
          %213 = sbr.rel (%p211) target = $region24
        $region23: #{tpu_custom_call.1} parent=11 // pred_region
          _
        $region24: #{tpu_custom_call.1} parent=11 // pred_fallthru
          _
        // Predicated region
        $region25: #{tpu_custom_call.1} parent=11 // pred_check
          %p214 = pneg %p141
        $region26: #{tpu_custom_call.1} parent=11 // pred_check_branch
          %216 = sbr.rel (%p214) target = $region28
        $region27: #{tpu_custom_call.1} parent=11 // pred_region
          _
        $region28: #{tpu_custom_call.1} parent=11 // pred_fallthru
          _
        // Predicated region
        $region29: #{tpu_custom_call.1} parent=11 // pred_check
          %p217 = pneg %p162
        $region30: #{tpu_custom_call.1} parent=11 // pred_check_branch
          %219 = sbr.rel (%p217) target = $region32
        $region31: #{tpu_custom_call.1} parent=11 // pred_region
          _
        $region32: #{tpu_custom_call.1} parent=11 // pred_fallthru
          _
      $region12: #{tpu_custom_call.1} parent=5 // pred_fallthru
        _
      %p220 = scmp.lt.s32.totalorder %s19, 2
      // Predicated region
      $region33: #{tpu_custom_call.1} parent=5 // pred_check
        %p221 = pneg %p220
      $region34: #{tpu_custom_call.1} parent=5 // pred_check_branch
        %223 = sbr.rel (%p221) target = $region36
      $region35: #{tpu_custom_call.1} parent=5 // pred_region
        // Predicated region
        $region37: #{tpu_custom_call.1} parent=35 // pred_check
          %p224 = pneg %p51
        $region38: #{tpu_custom_call.1} parent=35 // pred_check_branch
          %226 = sbr.rel (%p224) target = $region40
        $region39: #{tpu_custom_call.1} parent=35 // pred_region
          %s227 = sand.u32 %s41, 1
          %s228 = scalar_lea.sflag [#allocation6], %s227
          %s229 = sand.u32 %s41, 1
          %s230 = smul.addr %s229, 256
          %s231 = scalar_lea.vmem [#allocation5], %s230
          %s233 = ssub.s32 4096, 4096
          %234 = vsyncadd %s228, %s233
          %s235 = smul.addr %s26, 32
          %s236 = smul.addr %s235, 128
          %s237 = scalar_lea.hbm %s0, %s236
          %s238 = sshll.u32 %s231, 4
          %s239 = int_to_ptr.vmem [resolvable:$true] %s238
          %244 = dma.hbm_to_vmem [thread:$0]  %s237, 4096, %s239, %s228, 256, 256, 16
        $region40: #{tpu_custom_call.1} parent=35 // pred_fallthru
          _
      $region36: #{tpu_custom_call.1} parent=5 // pred_fallthru
        _
      %p245 = scmp.le.s32.totalorder 1, %s19
      %p246 = scmp.lt.s32.totalorder %s19, 3
      %p247 = pnand %p245, %p246
      %p248 = pneg %p247
      // Predicated region
      $region41: #{tpu_custom_call.1} parent=5 // pred_check
        _
      $region42: #{tpu_custom_call.1} parent=5 // pred_check_branch
        %250 = sbr.rel (%p247) target = $region44
      $region43: #{tpu_custom_call.1} parent=5 // pred_region
        %s251 = ssub.s32 %s19, 1
        %s252 = sand.u32 %s44, 1
        %s253 = scalar_lea.sflag [#allocation6], %s252
        %s254 = sand.u32 %s44, 1
        %s255 = smul.addr %s254, 256
        %s256 = scalar_lea.vmem [#allocation5], %s255
        // Predicated region
        $region45: #{tpu_custom_call.1} parent=43 // pred_check
          %p257 = pneg %p57
        $region46: #{tpu_custom_call.1} parent=43 // pred_check_branch
          %259 = sbr.rel (%p257) target = $region48
        $region47: #{tpu_custom_call.1} parent=43 // pred_region
          %260 = dma.done %s253, 4096
        $region48: #{tpu_custom_call.1} parent=43 // pred_fallthru
          _
        %s261 = sand.u32 %s44, 1
        %s262 = scalar_lea.sflag [#allocation6], %s261
        %s263 = sand.u32 %s44, 1
        %s264 = smul.addr %s263, 256
        %s265 = scalar_lea.vmem [#allocation5], %s264
        %p266 = pneg %p57
        %p267 = pneg %p54
        %p268 = pneg %p78
        %p269 = pneg %p75
        %p270 = pneg %p99
        %p271 = pneg %p96
        %p272 = pneg %p120
        %p273 = pneg %p117
        %p274 = pneg %p141
        %p275 = pneg %p138
        %p276 = pneg %p162
        %p277 = pneg %p159
        %p278 = pneg %p190
        %p279 = pneg %p187
        %s280 = sand.u32 %s177, 1
        %s281 = scalar_lea.sflag [#allocation7], %s280
        %s282 = sand.u32 %s177, 1
        %s283 = smul.addr %s282, 256
        %s284 = scalar_lea.vmem [#allocation8], %s283
        %s285 = smul.u32 2, %s29
        %p287 = scmp.eq.s32.totalorder %s29, 0
        // Predicated region
        $region49: #{tpu_custom_call.1} parent=43 // pred_check
          %p288 = pneg %p287
        $region50: #{tpu_custom_call.1} parent=43 // pred_check_branch
          %290 = sbr.rel (%p288) target = $region52
        $region51: #{tpu_custom_call.1} parent=43 // pred_region
          %v291 = vld [vmem:[%s256] sm:$0xff]
          %v292 = vld [vmem:[%s256 + $0x8] sm:$0xff]
          %v293 = vld [vmem:[%s256 + $0x10] sm:$0xff]
          %v294 = vld [vmem:[%s256 + $0x18] sm:$0xff]
          %v295 = vld [vmem:[%s256 + $0x20] sm:$0xff]
          %v296 = vld [vmem:[%s256 + $0x28] sm:$0xff]
          %v297 = vld [vmem:[%s256 + $0x30] sm:$0xff]
          %v298 = vld [vmem:[%s256 + $0x38] sm:$0xff]
          %v299 = vld [vmem:[%s256 + $0x40] sm:$0xff]
          %v300 = vld [vmem:[%s256 + $0x48] sm:$0xff]
          %v301 = vld [vmem:[%s256 + $0x50] sm:$0xff]
          %v302 = vld [vmem:[%s256 + $0x58] sm:$0xff]
          %v303 = vld [vmem:[%s256 + $0x60] sm:$0xff]
          %v304 = vld [vmem:[%s256 + $0x68] sm:$0xff]
          %v305 = vld [vmem:[%s256 + $0x70] sm:$0xff]
          %v306 = vld [vmem:[%s256 + $0x78] sm:$0xff]
          %v307 = vld [vmem:[%s256 + $0x80] sm:$0xff]
          %v308 = vld [vmem:[%s256 + $0x88] sm:$0xff]
          %v309 = vld [vmem:[%s256 + $0x90] sm:$0xff]
          %v310 = vld [vmem:[%s256 + $0x98] sm:$0xff]
          %v311 = vld [vmem:[%s256 + $0xa0] sm:$0xff]
          %v312 = vld [vmem:[%s256 + $0xa8] sm:$0xff]
          %v313 = vld [vmem:[%s256 + $0xb0] sm:$0xff]
          %v314 = vld [vmem:[%s256 + $0xb8] sm:$0xff]
          %v315 = vld [vmem:[%s256 + $0xc0] sm:$0xff]
          %v316 = vld [vmem:[%s256 + $0xc8] sm:$0xff]
          %v317 = vld [vmem:[%s256 + $0xd0] sm:$0xff]
          %v318 = vld [vmem:[%s256 + $0xd8] sm:$0xff]
          %v319 = vld [vmem:[%s256 + $0xe0] sm:$0xff]
          %v320 = vld [vmem:[%s256 + $0xe8] sm:$0xff]
          %v321 = vld [vmem:[%s256 + $0xf0] sm:$0xff]
          %v322 = vld [vmem:[%s256 + $0xf8] sm:$0xff]
          %v323 = vpack.c.bf16 %v293, %v291
          %v324 = vpack.c.bf16 %v294, %v292
          %v325 = vpack.c.bf16 %v297, %v295
          %v326 = vpack.c.bf16 %v298, %v296
          %v327 = vpack.c.bf16 %v301, %v299
          %v328 = vpack.c.bf16 %v302, %v300
          %v329 = vpack.c.bf16 %v305, %v303
          %v330 = vpack.c.bf16 %v306, %v304
          %v331 = vpack.c.bf16 %v309, %v307
          %v332 = vpack.c.bf16 %v310, %v308
          %v333 = vpack.c.bf16 %v313, %v311
          %v334 = vpack.c.bf16 %v314, %v312
          %v335 = vpack.c.bf16 %v317, %v315
          %v336 = vpack.c.bf16 %v318, %v316
          %v337 = vpack.c.bf16 %v321, %v319
          %v338 = vpack.c.bf16 %v322, %v320
          %v339 = vld [vmem:[%s1] sm:$0xf]
          %v340 = vld [vmem:[%s1 + $0x4] sm:$0xf]
          %v341 = vld [vmem:[%s1 + $0x8] sm:$0xf]
          %v342 = vld [vmem:[%s1 + $0xc] sm:$0xf]
          %v343 = vld [vmem:[%s1 + $0x10] sm:$0xf]
          %v344 = vld [vmem:[%s1 + $0x14] sm:$0xf]
          %v345 = vld [vmem:[%s1 + $0x18] sm:$0xf]
          %v346 = vld [vmem:[%s1 + $0x1c] sm:$0xf]
          %v347 = vld [vmem:[%s1 + $0x20] sm:$0xf]
          %v348 = vld [vmem:[%s1 + $0x24] sm:$0xf]
          %v349 = vld [vmem:[%s1 + $0x28] sm:$0xf]
          %v350 = vld [vmem:[%s1 + $0x2c] sm:$0xf]
          %v351 = vld [vmem:[%s1 + $0x30] sm:$0xf]
          %v352 = vld [vmem:[%s1 + $0x34] sm:$0xf]
          %v353 = vld [vmem:[%s1 + $0x38] sm:$0xf]
          %v354 = vld [vmem:[%s1 + $0x3c] sm:$0xf]
          %v355 = vld [vmem:[%s1 + $0x40] sm:$0xf]
          %v356 = vld [vmem:[%s1 + $0x44] sm:$0xf]
          %v357 = vld [vmem:[%s2] sm:$0xff]
          %v358 = vld [vmem:[%s2 + $0x8] sm:$0xff]
          %v359 = vld [vmem:[%s2 + $0x10] sm:$0xff]
          %v360 = vld [vmem:[%s2 + $0x18] sm:$0xff]
          %v361 = vld [vmem:[%s2 + $0x20] sm:$0xff]
          %v362 = vld [vmem:[%s2 + $0x28] sm:$0xff]
          %v363 = vld [vmem:[%s2 + $0x30] sm:$0xff]
          %v364 = vld [vmem:[%s2 + $0x38] sm:$0xff]
          %v365 = vld [vmem:[%s2 + $0x40] sm:$0xff]
          %v366 = vld [vmem:[%s2 + $0x48] sm:$0xff]
          %v367 = vld [vmem:[%s2 + $0x50] sm:$0xff]
          %v368 = vld [vmem:[%s2 + $0x58] sm:$0xff]
          %v369 = vld [vmem:[%s2 + $0x60] sm:$0xff]
          %v370 = vld [vmem:[%s2 + $0x68] sm:$0xff]
          %v371 = vld [vmem:[%s2 + $0x70] sm:$0xff]
          %v372 = vld [vmem:[%s2 + $0x78] sm:$0xff]
          %v373 = vld [vmem:[%s2 + $0x80] sm:$0xff]
          %v374 = vld [vmem:[%s2 + $0x88] sm:$0xff]
          %376 = vset.pattern.permute.xlu0 0
          %377 = vperm.xlu0 %376, %v357
          %v378 = vpop.permute.xlu0 %377
          %381 = vset.pattern.permute.xlu0 0
          %382 = vperm.xlu0 %381, %v358
          %v383 = vpop.permute.xlu0 %382
          %386 = vset.pattern.permute.xlu0 0
          %387 = vperm.xlu0 %386, %v359
          %v388 = vpop.permute.xlu0 %387
          %391 = vset.pattern.permute.xlu0 0
          %392 = vperm.xlu0 %391, %v360
          %v393 = vpop.permute.xlu0 %392
          %396 = vset.pattern.permute.xlu0 0
          %397 = vperm.xlu0 %396, %v361
          %v398 = vpop.permute.xlu0 %397
          %401 = vset.pattern.permute.xlu0 0
          %402 = vperm.xlu0 %401, %v362
          %v403 = vpop.permute.xlu0 %402
          %406 = vset.pattern.permute.xlu0 0
          %407 = vperm.xlu0 %406, %v363
          %v408 = vpop.permute.xlu0 %407
          %411 = vset.pattern.permute.xlu0 0
          %412 = vperm.xlu0 %411, %v364
          %v413 = vpop.permute.xlu0 %412
          %416 = vset.pattern.permute.xlu0 0
          %417 = vperm.xlu0 %416, %v365
          %v418 = vpop.permute.xlu0 %417
          %421 = vset.pattern.permute.xlu0 0
          %422 = vperm.xlu0 %421, %v366
          %v423 = vpop.permute.xlu0 %422
          %426 = vset.pattern.permute.xlu0 0
          %427 = vperm.xlu0 %426, %v367
          %v428 = vpop.permute.xlu0 %427
          %431 = vset.pattern.permute.xlu0 0
          %432 = vperm.xlu0 %431, %v368
          %v433 = vpop.permute.xlu0 %432
          %436 = vset.pattern.permute.xlu0 0
          %437 = vperm.xlu0 %436, %v369
          %v438 = vpop.permute.xlu0 %437
          %441 = vset.pattern.permute.xlu0 0
          %442 = vperm.xlu0 %441, %v370
          %v443 = vpop.permute.xlu0 %442
          %446 = vset.pattern.permute.xlu0 0
          %447 = vperm.xlu0 %446, %v371
          %v448 = vpop.permute.xlu0 %447
          %451 = vset.pattern.permute.xlu0 0
          %452 = vperm.xlu0 %451, %v372
          %v453 = vpop.permute.xlu0 %452
          %456 = vset.pattern.permute.xlu0 0
          %457 = vperm.xlu0 %456, %v373
          %v458 = vpop.permute.xlu0 %457
          %461 = vset.pattern.permute.xlu0 0
          %462 = vperm.xlu0 %461, %v374
          %v463 = vpop.permute.xlu0 %462
          %v483 = vunpack.c.l.b16 %v339
          %v484 = vunpack.c.l.b16 %v340
          %v485 = vunpack.c.l.b16 %v341
          %v486 = vunpack.c.l.b16 %v342
          %v487 = vunpack.c.l.b16 %v343
          %v488 = vunpack.c.l.b16 %v344
          %v489 = vunpack.c.l.b16 %v345
          %v490 = vunpack.c.l.b16 %v346
          %v491 = vunpack.c.l.b16 %v347
          %v492 = vunpack.c.l.b16 %v348
          %v493 = vunpack.c.l.b16 %v349
          %v494 = vunpack.c.l.b16 %v350
          %v495 = vunpack.c.l.b16 %v351
          %v496 = vunpack.c.l.b16 %v352
          %v497 = vunpack.c.l.b16 %v353
          %v498 = vunpack.c.l.b16 %v354
          %v499 = vunpack.c.l.b16 %v355
          %v500 = vunpack.c.l.b16 %v356
          %v501 = vpack.c.b16 %v484, %v483
          %v502 = vpack.c.b16 %v486, %v485
          %v503 = vpack.c.b16 %v488, %v487
          %v504 = vpack.c.b16 %v490, %v489
          %v505 = vpack.c.b16 %v492, %v491
          %v506 = vpack.c.b16 %v494, %v493
          %v507 = vpack.c.b16 %v496, %v495
          %v508 = vpack.c.b16 %v498, %v497
          %v509 = vpack.c.b16 %v500, %v499
          %519 = vmatprep.subr.bf16.mxu0 %v338
          %520 = vmatpush1.bf16.msra.mxu0 %v337
          %521 = vmatprep.subr.bf16.mxu0 %v336
          %522 = vmatpush1.bf16.msra.mxu0 %v335
          %523 = vmatprep.subr.bf16.mxu0 %v334
          %524 = vmatpush1.bf16.msra.mxu0 %v333
          %525 = vmatprep.subr.bf16.mxu0 %v332
          %526 = vmatpush1.bf16.msra.mxu0 %v331
          %527 = vmatprep.subr.bf16.mxu0 %v330
          %528 = vmatpush1.bf16.msra.mxu0 %v329
          %529 = vmatprep.subr.bf16.mxu0 %v328
          %530 = vmatpush1.bf16.msra.mxu0 %v327
          %531 = vmatprep.subr.bf16.mxu0 %v326
          %532 = vmatpush1.bf16.msra.mxu0 %v325
          %533 = vmatprep.subr.bf16.mxu0 %v324
          %534 = vmatpush1.bf16.msra.mxu0 %v323
          %535 = vmatprep.subr.bf16.mxu0 0
          %536 = vmatpush2.bf16.msra.mxu0 0
          %537 = vmatprep.subr.bf16.mxu0 0
          %538 = vmatpush2.bf16.msra.mxu0 0
          %539 = vmatprep.subr.bf16.mxu0 0
          %540 = vmatpush2.bf16.msra.mxu0 0
          %541 = vmatprep.subr.bf16.mxu0 0
          %542 = vmatpush2.bf16.msra.mxu0 0
          %543 = vmatprep.subr.bf16.mxu0 0
          %544 = vmatpush2.bf16.msra.mxu0 0
          %545 = vmatprep.subr.bf16.mxu0 0
          %546 = vmatpush2.bf16.msra.mxu0 0
          %547 = vmatprep.subr.bf16.mxu0 0
          %548 = vmatpush2.bf16.msra.mxu0 0
          %549 = vmatprep.subr.bf16.mxu0 0
          %550 = vmatpush2.bf16.msra.mxu0 0
          %551 = vmatprep.mubr.bf16.mxu0 0
          %552 = vmatmul.mubr.bf16.gmra.mxu0 %v501
          %v553 = vpop.f32.mrf.mxu0
          %v554 = vadd.f32 %v378, %v553
          %v555 = vpop.f32.mrf.mxu0
          %v556 = vadd.f32 %v378, %v555
          %v557 = vpop.f32.mrf.mxu0
          %v558 = vadd.f32 %v383, %v557
          %v559 = vpop.f32.mrf.mxu0
          %v560 = vadd.f32 %v383, %v559
          %561 = vmatprep.mubr.bf16.mxu0 0
          %562 = vmatmul.mubr.bf16.gmra.mxu0 %v502
          %v563 = vpop.f32.mrf.mxu0
          %v564 = vadd.f32 %v388, %v563
          %v565 = vpop.f32.mrf.mxu0
          %v566 = vadd.f32 %v388, %v565
          %v567 = vpop.f32.mrf.mxu0
          %v568 = vadd.f32 %v393, %v567
          %v569 = vpop.f32.mrf.mxu0
          %v570 = vadd.f32 %v393, %v569
          %571 = vmatprep.mubr.bf16.mxu0 0
          %572 = vmatmul.mubr.bf16.gmra.mxu0 %v503
          %v573 = vpop.f32.mrf.mxu0
          %v574 = vadd.f32 %v398, %v573
          %v575 = vpop.f32.mrf.mxu0
          %v576 = vadd.f32 %v398, %v575
          %v577 = vpop.f32.mrf.mxu0
          %v578 = vadd.f32 %v403, %v577
          %v579 = vpop.f32.mrf.mxu0
          %v580 = vadd.f32 %v403, %v579
          %581 = vmatprep.mubr.bf16.mxu0 0
          %582 = vmatmul.mubr.bf16.gmra.mxu0 %v504
          %v583 = vpop.f32.mrf.mxu0
          %v584 = vadd.f32 %v408, %v583
          %v585 = vpop.f32.mrf.mxu0
          %v586 = vadd.f32 %v408, %v585
          %v587 = vpop.f32.mrf.mxu0
          %v588 = vadd.f32 %v413, %v587
          %v589 = vpop.f32.mrf.mxu0
          %v590 = vadd.f32 %v413, %v589
          %591 = vmatprep.mubr.bf16.mxu0 0
          %592 = vmatmul.mubr.bf16.gmra.mxu0 %v505
          %v593 = vpop.f32.mrf.mxu0
          %v594 = vadd.f32 %v418, %v593
          %v595 = vpop.f32.mrf.mxu0
          %v596 = vadd.f32 %v418, %v595
          %v597 = vpop.f32.mrf.mxu0
          %v598 = vadd.f32 %v423, %v597
          %v599 = vpop.f32.mrf.mxu0
          %v600 = vadd.f32 %v423, %v599
          %601 = vmatprep.mubr.bf16.mxu0 0
          %602 = vmatmul.mubr.bf16.gmra.mxu0 %v506
          %v603 = vpop.f32.mrf.mxu0
          %v604 = vadd.f32 %v428, %v603
          %v605 = vpop.f32.mrf.mxu0
          %v606 = vadd.f32 %v428, %v605
          %v607 = vpop.f32.mrf.mxu0
          %v608 = vadd.f32 %v433, %v607
          %v609 = vpop.f32.mrf.mxu0
          %v610 = vadd.f32 %v433, %v609
          %611 = vmatprep.mubr.bf16.mxu0 0
          %612 = vmatmul.mubr.bf16.gmra.mxu0 %v507
          %v613 = vpop.f32.mrf.mxu0
          %v614 = vadd.f32 %v438, %v613
          %v615 = vpop.f32.mrf.mxu0
          %v616 = vadd.f32 %v438, %v615
          %v617 = vpop.f32.mrf.mxu0
          %v618 = vadd.f32 %v443, %v617
          %v619 = vpop.f32.mrf.mxu0
          %v620 = vadd.f32 %v443, %v619
          %621 = vmatprep.mubr.bf16.mxu0 0
          %622 = vmatmul.mubr.bf16.gmra.mxu0 %v508
          %v623 = vpop.f32.mrf.mxu0
          %v624 = vadd.f32 %v448, %v623
          %v625 = vpop.f32.mrf.mxu0
          %v626 = vadd.f32 %v448, %v625
          %v627 = vpop.f32.mrf.mxu0
          %v628 = vadd.f32 %v453, %v627
          %v629 = vpop.f32.mrf.mxu0
          %v630 = vadd.f32 %v453, %v629
          %631 = vmatprep.mubr.bf16.mxu0 0
          %632 = vmatmul.mubr.bf16.gmra.mxu0 %v509
          %v633 = vpop.f32.mrf.mxu0
          %v634 = vadd.f32 %v458, %v633
          %v635 = vpop.f32.mrf.mxu0
          %v636 = vadd.f32 %v458, %v635
          %v637 = vpop.f32.mrf.mxu0
          %v638 = vadd.f32 %v463, %v637
          %v639 = vpop.f32.mrf.mxu0
          %v640 = vadd.f32 %v463, %v639
          %641 = vdwg.mxu0
          %v642 = vpack.c.bf16 %v558, %v554
          %v643 = vpack.c.bf16 %v560, %v556
          %v646 = vunpack.c.l.b16 %v642
          %v647 = vunpack.c.l.b16 %v643
          %v648 = vunpack.c.h.b16 %v642
          %v649 = vunpack.c.h.b16 %v643
          %v650 = vpack.c.b16 %v647, %v646
          %v651 = vpack.c.b16 %v649, %v648
          %654 = vst [vmem:[#allocation2] sm:$0xff] %v650
          %655 = vst [vmem:[#allocation2 + $0x8] sm:$0xff] %v651
          %v656 = vpack.c.bf16 %v568, %v564
          %v657 = vpack.c.bf16 %v570, %v566
          %v658 = vpack.c.bf16 %v578, %v574
          %v659 = vpack.c.bf16 %v580, %v576
          %v660 = vpack.c.bf16 %v588, %v584
          %v661 = vpack.c.bf16 %v590, %v586
          %v662 = vpack.c.bf16 %v598, %v594
          %v663 = vpack.c.bf16 %v600, %v596
          %v664 = vpack.c.bf16 %v608, %v604
          %v665 = vpack.c.bf16 %v610, %v606
          %v666 = vpack.c.bf16 %v618, %v614
          %v667 = vpack.c.bf16 %v620, %v616
          %v668 = vpack.c.bf16 %v628, %v624
          %v669 = vpack.c.bf16 %v630, %v626
          %v670 = vpack.c.bf16 %v638, %v634
          %v671 = vpack.c.bf16 %v640, %v636
          %v688 = vunpack.c.l.b16 %v656
          %v689 = vunpack.c.l.b16 %v657
          %v690 = vunpack.c.h.b16 %v656
          %v691 = vunpack.c.h.b16 %v657
          %v692 = vunpack.c.l.b16 %v658
          %v693 = vunpack.c.l.b16 %v659
          %v694 = vunpack.c.h.b16 %v658
          %v695 = vunpack.c.h.b16 %v659
          %v696 = vunpack.c.l.b16 %v660
          %v697 = vunpack.c.l.b16 %v661
          %v698 = vunpack.c.h.b16 %v660
          %v699 = vunpack.c.h.b16 %v661
          %v700 = vunpack.c.l.b16 %v662
          %v701 = vunpack.c.l.b16 %v663
          %v702 = vunpack.c.h.b16 %v662
          %v703 = vunpack.c.h.b16 %v663
          %v704 = vunpack.c.l.b16 %v664
          %v705 = vunpack.c.l.b16 %v665
          %v706 = vunpack.c.h.b16 %v664
          %v707 = vunpack.c.h.b16 %v665
          %v708 = vunpack.c.l.b16 %v666
          %v709 = vunpack.c.l.b16 %v667
          %v710 = vunpack.c.h.b16 %v666
          %v711 = vunpack.c.h.b16 %v667
          %v712 = vunpack.c.l.b16 %v668
          %v713 = vunpack.c.l.b16 %v669
          %v714 = vunpack.c.h.b16 %v668
          %v715 = vunpack.c.h.b16 %v669
          %v716 = vunpack.c.l.b16 %v670
          %v717 = vunpack.c.l.b16 %v671
          %v718 = vunpack.c.h.b16 %v670
          %v719 = vunpack.c.h.b16 %v671
          %v720 = vpack.c.b16 %v689, %v688
          %v721 = vpack.c.b16 %v691, %v690
          %v722 = vpack.c.b16 %v693, %v692
          %v723 = vpack.c.b16 %v695, %v694
          %v724 = vpack.c.b16 %v697, %v696
          %v725 = vpack.c.b16 %v699, %v698
          %v726 = vpack.c.b16 %v701, %v700
          %v727 = vpack.c.b16 %v703, %v702
          %v728 = vpack.c.b16 %v705, %v704
          %v729 = vpack.c.b16 %v707, %v706
          %v730 = vpack.c.b16 %v709, %v708
          %v731 = vpack.c.b16 %v711, %v710
          %v732 = vpack.c.b16 %v713, %v712
          %v733 = vpack.c.b16 %v715, %v714
          %v734 = vpack.c.b16 %v717, %v716
          %v735 = vpack.c.b16 %v719, %v718
          %752 = vst [vmem:[#allocation3] sm:$0xff] %v720
          %753 = vst [vmem:[#allocation3 + $0x8] sm:$0xff] %v721
          %754 = vst [vmem:[#allocation3 + $0x10] sm:$0xff] %v722
          %755 = vst [vmem:[#allocation3 + $0x18] sm:$0xff] %v723
          %756 = vst [vmem:[#allocation3 + $0x20] sm:$0xff] %v724
          %757 = vst [vmem:[#allocation3 + $0x28] sm:$0xff] %v725
          %758 = vst [vmem:[#allocation3 + $0x30] sm:$0xff] %v726
          %759 = vst [vmem:[#allocation3 + $0x38] sm:$0xff] %v727
          %760 = vst [vmem:[#allocation3 + $0x40] sm:$0xff] %v728
          %761 = vst [vmem:[#allocation3 + $0x48] sm:$0xff] %v729
          %762 = vst [vmem:[#allocation3 + $0x50] sm:$0xff] %v730
          %763 = vst [vmem:[#allocation3 + $0x58] sm:$0xff] %v731
          %764 = vst [vmem:[#allocation3 + $0x60] sm:$0xff] %v732
          %765 = vst [vmem:[#allocation3 + $0x68] sm:$0xff] %v733
          %766 = vst [vmem:[#allocation3 + $0x70] sm:$0xff] %v734
          %767 = vst [vmem:[#allocation3 + $0x78] sm:$0xff] %v735
        $region52: #{tpu_custom_call.1} parent=43 // pred_fallthru
          _
        %s768 = smul.u32 %s29, 256
        %s769 = sshra.s32 %s768, 7
        %s770 = sand.u32 %s768, 127
        %s771 = smul.addr %s769, 8
        %s772 = scalar_lea.vmem %s256, %s771 [#allocation5]
        %v773 = vld [vmem:[%s772] sm:$0xff]
        %v774 = vld [vmem:[%s772 + $0x8] sm:$0xff]
        %v775 = vld [vmem:[%s772 + $0x10] sm:$0xff]
        %v776 = vld [vmem:[%s772 + $0x18] sm:$0xff]
        %v777 = vld [vmem:[%s772 + $0x20] sm:$0xff]
        %v778 = vld [vmem:[%s772 + $0x28] sm:$0xff]
        %v779 = vld [vmem:[%s772 + $0x30] sm:$0xff]
        %v780 = vld [vmem:[%s772 + $0x38] sm:$0xff]
        %v781 = vld [vmem:[%s772 + $0x40] sm:$0xff]
        %v782 = vld [vmem:[%s772 + $0x48] sm:$0xff]
        %v783 = vld [vmem:[%s772 + $0x50] sm:$0xff]
        %v784 = vld [vmem:[%s772 + $0x58] sm:$0xff]
        %v785 = vld [vmem:[%s772 + $0x60] sm:$0xff]
        %v786 = vld [vmem:[%s772 + $0x68] sm:$0xff]
        %v787 = vld [vmem:[%s772 + $0x70] sm:$0xff]
        %v788 = vld [vmem:[%s772 + $0x78] sm:$0xff]
        %v789 = vld [vmem:[%s772 + $0x80] sm:$0xff]
        %v790 = vld [vmem:[%s772 + $0x88] sm:$0xff]
        %v791 = vld [vmem:[%s772 + $0x90] sm:$0xff]
        %v792 = vld [vmem:[%s772 + $0x98] sm:$0xff]
        %v793 = vld [vmem:[%s772 + $0xa0] sm:$0xff]
        %v794 = vld [vmem:[%s772 + $0xa8] sm:$0xff]
        %v795 = vld [vmem:[%s772 + $0xb0] sm:$0xff]
        %v796 = vld [vmem:[%s772 + $0xb8] sm:$0xff]
        %v797 = vld [vmem:[%s772 + $0xc0] sm:$0xff]
        %v798 = vld [vmem:[%s772 + $0xc8] sm:$0xff]
        %v799 = vld [vmem:[%s772 + $0xd0] sm:$0xff]
        %v800 = vld [vmem:[%s772 + $0xd8] sm:$0xff]
        %v801 = vld [vmem:[%s772 + $0xe0] sm:$0xff]
        %v802 = vld [vmem:[%s772 + $0xe8] sm:$0xff]
        %v803 = vld [vmem:[%s772 + $0xf0] sm:$0xff]
        %v804 = vld [vmem:[%s772 + $0xf8] sm:$0xff]
        %v805 = vld [vmem:[%s3] sm:$0xf]
        %v806 = vld [vmem:[%s3 + $0x4] sm:$0xf]
        %v807 = vpack.c.bf16 %v775, %v773
        %v808 = vpack.c.bf16 %v776, %v774
        %v809 = vpack.c.bf16 %v779, %v777
        %v810 = vpack.c.bf16 %v780, %v778
        %v811 = vpack.c.bf16 %v783, %v781
        %v812 = vpack.c.bf16 %v784, %v782
        %v813 = vpack.c.bf16 %v787, %v785
        %v814 = vpack.c.bf16 %v788, %v786
        %v815 = vpack.c.bf16 %v791, %v789
        %v816 = vpack.c.bf16 %v792, %v790
        %v817 = vpack.c.bf16 %v795, %v793
        %v818 = vpack.c.bf16 %v796, %v794
        %v819 = vpack.c.bf16 %v799, %v797
        %v820 = vpack.c.bf16 %v800, %v798
        %v821 = vpack.c.bf16 %v803, %v801
        %v822 = vpack.c.bf16 %v804, %v802
        %v823 = vld [vmem:[%s4] sm:$0xff]
        %v824 = vld [vmem:[%s4 + $0x8] sm:$0xff]
        %826 = vset.pattern.permute.xlu0 0
        %827 = vperm.xlu0 %826, %v823
        %v828 = vpop.permute.xlu0 %827
        %831 = vset.pattern.permute.xlu0 0
        %832 = vperm.xlu0 %831, %v824
        %v833 = vpop.permute.xlu0 %832
        %v837 = vunpack.c.l.b16 %v805
        %v838 = vunpack.c.l.b16 %v806
        %v839 = vpack.c.b16 %v838, %v837
        %841 = vmatprep.subr.bf16.mxu0 %v822
        %842 = vmatpush1.bf16.msra.mxu0 %v821
        %843 = vmatprep.subr.bf16.mxu0 %v820
        %844 = vmatpush1.bf16.msra.mxu0 %v819
        %845 = vmatprep.subr.bf16.mxu0 %v818
        %846 = vmatpush1.bf16.msra.mxu0 %v817
        %847 = vmatprep.subr.bf16.mxu0 %v816
        %848 = vmatpush1.bf16.msra.mxu0 %v815
        %849 = vmatprep.subr.bf16.mxu0 %v814
        %850 = vmatpush1.bf16.msra.mxu0 %v813
        %851 = vmatprep.subr.bf16.mxu0 %v812
        %852 = vmatpush1.bf16.msra.mxu0 %v811
        %853 = vmatprep.subr.bf16.mxu0 %v810
        %854 = vmatpush1.bf16.msra.mxu0 %v809
        %855 = vmatprep.subr.bf16.mxu0 %v808
        %856 = vmatpush1.bf16.msra.mxu0 %v807
        %857 = vmatprep.subr.bf16.mxu0 0
        %858 = vmatpush2.bf16.msra.mxu0 0
        %859 = vmatprep.subr.bf16.mxu0 0
        %860 = vmatpush2.bf16.msra.mxu0 0
        %861 = vmatprep.subr.bf16.mxu0 0
        %862 = vmatpush2.bf16.msra.mxu0 0
        %863 = vmatprep.subr.bf16.mxu0 0
        %864 = vmatpush2.bf16.msra.mxu0 0
        %865 = vmatprep.subr.bf16.mxu0 0
        %866 = vmatpush2.bf16.msra.mxu0 0
        %867 = vmatprep.subr.bf16.mxu0 0
        %868 = vmatpush2.bf16.msra.mxu0 0
        %869 = vmatprep.subr.bf16.mxu0 0
        %870 = vmatpush2.bf16.msra.mxu0 0
        %871 = vmatprep.subr.bf16.mxu0 0
        %872 = vmatpush2.bf16.msra.mxu0 0
        %873 = vmatprep.mubr.bf16.mxu0 0
        %874 = vmatmul.mubr.bf16.gmra.mxu0 %v839
        %v875 = vpop.f32.mrf.mxu0
        %v876 = vadd.f32 %v828, %v875
        %v877 = vpop.f32.mrf.mxu0
        %v878 = vadd.f32 %v828, %v877
        %v879 = vpop.f32.mrf.mxu0
        %v880 = vadd.f32 %v833, %v879
        %v881 = vpop.f32.mrf.mxu0
        %v882 = vadd.f32 %v833, %v881
        %883 = vdwg.mxu0
        %v884 = vpack.c.bf16 %v880, %v876
        %v885 = vpack.c.bf16 %v882, %v878
        %v886 = vld [vmem:[#allocation2] sm:$0xff]
        %v887 = vld [vmem:[#allocation2 + $0x8] sm:$0xff]
        %v890 = vunpack.c.l.b16 %v886
        %v891 = vunpack.c.h.b16 %v886
        %v892 = vunpack.c.l.b16 %v887
        %v893 = vunpack.c.h.b16 %v887
        %v894 = vpack.c.b16 %v892, %v890
        %v895 = vpack.c.b16 %v893, %v891
        %898 = vxpose.xlu0.c.b16.start [1/8] %v894, 128
        %899 = vxpose.xlu0.c.b16.cont [2/8] 0, 128
        %900 = vxpose.xlu0.c.b16.cont [3/8] 0, 128
        %901 = vxpose.xlu0.c.b16.cont [4/8] 0, 128
        %902 = vxpose.xlu0.c.b16.cont [5/8] 0, 128
        %903 = vxpose.xlu0.c.b16.cont [6/8] 0, 128
        %904 = vxpose.xlu0.c.b16.cont [7/8] 0, 128
        %905 = vxpose.xlu0.c.b16.end [8/8] 0, 128
        %v906 = vpop.trf.xlu0
        %v907 = vpop.trf.xlu0
        %v908 = vpop.trf.xlu0
        %v909 = vpop.trf.xlu0
        %v910 = vpop.trf.xlu0
        %v911 = vpop.trf.xlu0
        %v912 = vpop.trf.xlu0
        %v913 = vpop.trf.xlu0
        %914 = vxpose.xlu0.c.b16.start [1/8] %v895, 128
        %915 = vxpose.xlu0.c.b16.cont [2/8] 0, 128
        %916 = vxpose.xlu0.c.b16.cont [3/8] 0, 128
        %917 = vxpose.xlu0.c.b16.cont [4/8] 0, 128
        %918 = vxpose.xlu0.c.b16.cont [5/8] 0, 128
        %919 = vxpose.xlu0.c.b16.cont [6/8] 0, 128
        %920 = vxpose.xlu0.c.b16.cont [7/8] 0, 128
        %921 = vxpose.xlu0.c.b16.end [8/8] 0, 128
        %v922 = vpop.trf.xlu0
        %v923 = vpop.trf.xlu0
        %v924 = vpop.trf.xlu0
        %v925 = vpop.trf.xlu0
        %v926 = vpop.trf.xlu0
        %v927 = vpop.trf.xlu0
        %v928 = vpop.trf.xlu0
        %v929 = vpop.trf.xlu0
        %vm930 = vcmask 130048
        %v932 = vsel %vm930, %v906, 0
        %v935 = vsel %vm930, %v907, 0
        %v938 = vsel %vm930, %v908, 0
        %v941 = vsel %vm930, %v909, 0
        %v944 = vsel %vm930, %v910, 0
        %v947 = vsel %vm930, %v911, 0
        %v950 = vsel %vm930, %v912, 0
        %v953 = vsel %vm930, %v913, 0
        %v956 = vsel %vm930, %v922, 0
        %v959 = vsel %vm930, %v923, 0
        %v962 = vsel %vm930, %v924, 0
        %v965 = vsel %vm930, %v925, 0
        %v968 = vsel %vm930, %v926, 0
        %v971 = vsel %vm930, %v927, 0
        %v974 = vsel %vm930, %v928, 0
        %v977 = vsel %vm930, %v929, 0
        %979 = vmatprep.subr.bf16.mxu0 0
        %980 = vmatpush1.bf16.msra.mxu0 0
        %981 = vmatprep.subr.bf16.mxu0 0
        %982 = vmatpush1.bf16.msra.mxu0 0
        %983 = vmatprep.subr.bf16.mxu0 0
        %984 = vmatpush1.bf16.msra.mxu0 0
        %985 = vmatprep.subr.bf16.mxu0 0
        %986 = vmatpush1.bf16.msra.mxu0 0
        %987 = vmatprep.subr.bf16.mxu0 0
        %988 = vmatpush1.bf16.msra.mxu0 0
        %989 = vmatprep.subr.bf16.mxu0 0
        %990 = vmatpush1.bf16.msra.mxu0 0
        %991 = vmatprep.subr.bf16.mxu0 0
        %992 = vmatpush1.bf16.msra.mxu0 0
        %993 = vmatprep.subr.bf16.mxu0 %v885
        %994 = vmatpush1.bf16.msra.mxu0 %v884
        %995 = vmatprep.subr.bf16.mxu0 0
        %996 = vmatpush2.bf16.msra.mxu0 0
        %997 = vmatprep.subr.bf16.mxu0 0
        %998 = vmatpush2.bf16.msra.mxu0 0
        %999 = vmatprep.subr.bf16.mxu0 0
        %1000 = vmatpush2.bf16.msra.mxu0 0
        %1001 = vmatprep.subr.bf16.mxu0 0
        %1002 = vmatpush2.bf16.msra.mxu0 0
        %1003 = vmatprep.subr.bf16.mxu0 0
        %1004 = vmatpush2.bf16.msra.mxu0 0
        %1005 = vmatprep.subr.bf16.mxu0 0
        %1006 = vmatpush2.bf16.msra.mxu0 0
        %1007 = vmatprep.subr.bf16.mxu0 0
        %1008 = vmatpush2.bf16.msra.mxu0 0
        %1009 = vmatprep.subr.bf16.mxu0 0
        %1010 = vmatpush2.bf16.msra.mxu0 0
        %1011 = vmatprep.mubr.bf16.mxu0 0
        %1012 = vmatmul.mubr.bf16.gmra.mxu0 %v932
        %v1013 = vpop.f32.mrf.mxu0
        %v1014 = vadd.f32 0.0, %v1013
        %v1015 = vpop.f32.mrf.mxu0
        %v1016 = vadd.f32 0.0, %v1015
        %v1017 = vpop.f32.mrf.mxu0
        %v1018 = vadd.f32 0.0, %v1017
        %v1019 = vpop.f32.mrf.mxu0
        %v1020 = vadd.f32 0.0, %v1019
        %1021 = vmatprep.mubr.bf16.mxu0 0
        %1022 = vmatmul.mubr.bf16.gmra.mxu0 %v935
        %v1023 = vpop.f32.mrf.mxu0
        %v1024 = vadd.f32 0.0, %v1023
        %v1025 = vpop.f32.mrf.mxu0
        %v1026 = vadd.f32 0.0, %v1025
        %v1027 = vpop.f32.mrf.mxu0
        %v1028 = vadd.f32 0.0, %v1027
        %v1029 = vpop.f32.mrf.mxu0
        %v1030 = vadd.f32 0.0, %v1029
        %1031 = vmatprep.mubr.bf16.mxu0 0
        %1032 = vmatmul.mubr.bf16.gmra.mxu0 %v938
        %v1033 = vpop.f32.mrf.mxu0
        %v1034 = vadd.f32 0.0, %v1033
        %v1035 = vpop.f32.mrf.mxu0
        %v1036 = vadd.f32 0.0, %v1035
        %v1037 = vpop.f32.mrf.mxu0
        %v1038 = vadd.f32 0.0, %v1037
        %v1039 = vpop.f32.mrf.mxu0
        %v1040 = vadd.f32 0.0, %v1039
        %1041 = vmatprep.mubr.bf16.mxu0 0
        %1042 = vmatmul.mubr.bf16.gmra.mxu0 %v941
        %v1043 = vpop.f32.mrf.mxu0
        %v1044 = vadd.f32 0.0, %v1043
        %v1045 = vpop.f32.mrf.mxu0
        %v1046 = vadd.f32 0.0, %v1045
        %v1047 = vpop.f32.mrf.mxu0
        %v1048 = vadd.f32 0.0, %v1047
        %v1049 = vpop.f32.mrf.mxu0
        %v1050 = vadd.f32 0.0, %v1049
        %1051 = vmatprep.mubr.bf16.mxu0 0
        %1052 = vmatmul.mubr.bf16.gmra.mxu0 %v944
        %v1053 = vpop.f32.mrf.mxu0
        %v1054 = vadd.f32 0.0, %v1053
        %v1055 = vpop.f32.mrf.mxu0
        %v1056 = vadd.f32 0.0, %v1055
        %v1057 = vpop.f32.mrf.mxu0
        %v1058 = vadd.f32 0.0, %v1057
        %v1059 = vpop.f32.mrf.mxu0
        %v1060 = vadd.f32 0.0, %v1059
        %1061 = vmatprep.mubr.bf16.mxu0 0
        %1062 = vmatmul.mubr.bf16.gmra.mxu0 %v947
        %v1063 = vpop.f32.mrf.mxu0
        %v1064 = vadd.f32 0.0, %v1063
        %v1065 = vpop.f32.mrf.mxu0
        %v1066 = vadd.f32 0.0, %v1065
        %v1067 = vpop.f32.mrf.mxu0
        %v1068 = vadd.f32 0.0, %v1067
        %v1069 = vpop.f32.mrf.mxu0
        %v1070 = vadd.f32 0.0, %v1069
        %1071 = vmatprep.mubr.bf16.mxu0 0
        %1072 = vmatmul.mubr.bf16.gmra.mxu0 %v950
        %v1073 = vpop.f32.mrf.mxu0
        %v1074 = vadd.f32 0.0, %v1073
        %v1075 = vpop.f32.mrf.mxu0
        %v1076 = vadd.f32 0.0, %v1075
        %v1077 = vpop.f32.mrf.mxu0
        %v1078 = vadd.f32 0.0, %v1077
        %v1079 = vpop.f32.mrf.mxu0
        %v1080 = vadd.f32 0.0, %v1079
        %1081 = vmatprep.mubr.bf16.mxu0 0
        %1082 = vmatmul.mubr.bf16.gmra.mxu0 %v953
        %v1083 = vpop.f32.mrf.mxu0
        %v1084 = vadd.f32 0.0, %v1083
        %v1085 = vpop.f32.mrf.mxu0
        %v1086 = vadd.f32 0.0, %v1085
        %v1087 = vpop.f32.mrf.mxu0
        %v1088 = vadd.f32 0.0, %v1087
        %v1089 = vpop.f32.mrf.mxu0
        %v1090 = vadd.f32 0.0, %v1089
        %1091 = vmatprep.mubr.bf16.mxu0 0
        %1092 = vmatmul.mubr.bf16.gmra.mxu0 %v956
        %v1093 = vpop.f32.mrf.mxu0
        %v1094 = vadd.f32 0.0, %v1093
        %v1095 = vpop.f32.mrf.mxu0
        %v1096 = vadd.f32 0.0, %v1095
        %v1097 = vpop.f32.mrf.mxu0
        %v1098 = vadd.f32 0.0, %v1097
        %v1099 = vpop.f32.mrf.mxu0
        %v1100 = vadd.f32 0.0, %v1099
        %1101 = vmatprep.mubr.bf16.mxu0 0
        %1102 = vmatmul.mubr.bf16.gmra.mxu0 %v959
        %v1103 = vpop.f32.mrf.mxu0
        %v1104 = vadd.f32 0.0, %v1103
        %v1105 = vpop.f32.mrf.mxu0
        %v1106 = vadd.f32 0.0, %v1105
        %v1107 = vpop.f32.mrf.mxu0
        %v1108 = vadd.f32 0.0, %v1107
        %v1109 = vpop.f32.mrf.mxu0
        %v1110 = vadd.f32 0.0, %v1109
        %1111 = vmatprep.mubr.bf16.mxu0 0
        %1112 = vmatmul.mubr.bf16.gmra.mxu0 %v962
        %v1113 = vpop.f32.mrf.mxu0
        %v1114 = vadd.f32 0.0, %v1113
        %v1115 = vpop.f32.mrf.mxu0
        %v1116 = vadd.f32 0.0, %v1115
        %v1117 = vpop.f32.mrf.mxu0
        %v1118 = vadd.f32 0.0, %v1117
        %v1119 = vpop.f32.mrf.mxu0
        %v1120 = vadd.f32 0.0, %v1119
        %1121 = vmatprep.mubr.bf16.mxu0 0
        %1122 = vmatmul.mubr.bf16.gmra.mxu0 %v965
        %v1123 = vpop.f32.mrf.mxu0
        %v1124 = vadd.f32 0.0, %v1123
        %v1125 = vpop.f32.mrf.mxu0
        %v1126 = vadd.f32 0.0, %v1125
        %v1127 = vpop.f32.mrf.mxu0
        %v1128 = vadd.f32 0.0, %v1127
        %v1129 = vpop.f32.mrf.mxu0
        %v1130 = vadd.f32 0.0, %v1129
        %1131 = vmatprep.mubr.bf16.mxu0 0
        %1132 = vmatmul.mubr.bf16.gmra.mxu0 %v968
        %v1133 = vpop.f32.mrf.mxu0
        %v1134 = vadd.f32 0.0, %v1133
        %v1135 = vpop.f32.mrf.mxu0
        %v1136 = vadd.f32 0.0, %v1135
        %v1137 = vpop.f32.mrf.mxu0
        %v1138 = vadd.f32 0.0, %v1137
        %v1139 = vpop.f32.mrf.mxu0
        %v1140 = vadd.f32 0.0, %v1139
        %1141 = vmatprep.mubr.bf16.mxu0 0
        %1142 = vmatmul.mubr.bf16.gmra.mxu0 %v971
        %v1143 = vpop.f32.mrf.mxu0
        %v1144 = vadd.f32 0.0, %v1143
        %v1145 = vpop.f32.mrf.mxu0
        %v1146 = vadd.f32 0.0, %v1145
        %v1147 = vpop.f32.mrf.mxu0
        %v1148 = vadd.f32 0.0, %v1147
        %v1149 = vpop.f32.mrf.mxu0
        %v1150 = vadd.f32 0.0, %v1149
        %1151 = vmatprep.mubr.bf16.mxu0 0
        %1152 = vmatmul.mubr.bf16.gmra.mxu0 %v974
        %v1153 = vpop.f32.mrf.mxu0
        %v1154 = vadd.f32 0.0, %v1153
        %v1155 = vpop.f32.mrf.mxu0
        %v1156 = vadd.f32 0.0, %v1155
        %v1157 = vpop.f32.mrf.mxu0
        %v1158 = vadd.f32 0.0, %v1157
        %v1159 = vpop.f32.mrf.mxu0
        %v1160 = vadd.f32 0.0, %v1159
        %1161 = vmatprep.mubr.bf16.mxu0 0
        %1162 = vmatmul.mubr.bf16.gmra.mxu0 %v977
        %v1163 = vpop.f32.mrf.mxu0
        %v1164 = vadd.f32 0.0, %v1163
        %v1165 = vpop.f32.mrf.mxu0
        %v1166 = vadd.f32 0.0, %v1165
        %v1167 = vpop.f32.mrf.mxu0
        %v1168 = vadd.f32 0.0, %v1167
        %v1169 = vpop.f32.mrf.mxu0
        %v1170 = vadd.f32 0.0, %v1169
        %1171 = vdwg.mxu0
        %v1172 = vmax.f32 %v1014, %v1024
        %v1173 = vmax.f32 %v1018, %v1028
        %v1174 = vmax.f32 %v1172, %v1034
        %v1175 = vmax.f32 %v1173, %v1038
        %v1176 = vmax.f32 %v1174, %v1044
        %v1177 = vmax.f32 %v1175, %v1048
        %v1178 = vmax.f32 %v1176, %v1054
        %v1179 = vmax.f32 %v1177, %v1058
        %v1180 = vmax.f32 %v1178, %v1064
        %v1181 = vmax.f32 %v1179, %v1068
        %v1182 = vmax.f32 %v1180, %v1074
        %v1183 = vmax.f32 %v1181, %v1078
        %v1184 = vmax.f32 %v1182, %v1084
        %v1185 = vmax.f32 %v1183, %v1088
        %v1186 = vmax.f32 %v1184, %v1094
        %v1187 = vmax.f32 %v1185, %v1098
        %v1188 = vmax.f32 %v1186, %v1104
        %v1189 = vmax.f32 %v1187, %v1108
        %v1190 = vmax.f32 %v1188, %v1114
        %v1191 = vmax.f32 %v1189, %v1118
        %v1192 = vmax.f32 %v1190, %v1124
        %v1193 = vmax.f32 %v1191, %v1128
        %v1194 = vmax.f32 %v1192, %v1134
        %v1195 = vmax.f32 %v1193, %v1138
        %v1196 = vmax.f32 %v1194, %v1144
        %v1197 = vmax.f32 %v1195, %v1148
        %v1198 = vmax.f32 %v1196, %v1154
        %v1199 = vmax.f32 %v1197, %v1158
        %v1200 = vmax.f32 %v1198, %v1164
        %v1201 = vmax.f32 %v1199, %v1168
        %v1202 = vmax.f32 %v1200, %v1201
        %v1203 = vrot.slane %v1202, 4
        %v1204 = vmax.f32 %v1202, %v1203
        %v1205 = vrot.slane %v1204, 2
        %v1206 = vmax.f32 %v1204, %v1205
        %v1207 = vrot.slane %v1206, 1
        %v1208 = vmax.f32 %v1206, %v1207
        %v1209 = vmax.f32 %v1016, %v1026
        %v1210 = vmax.f32 %v1020, %v1030
        %v1211 = vmax.f32 %v1209, %v1036
        %v1212 = vmax.f32 %v1210, %v1040
        %v1213 = vmax.f32 %v1211, %v1046
        %v1214 = vmax.f32 %v1212, %v1050
        %v1215 = vmax.f32 %v1213, %v1056
        %v1216 = vmax.f32 %v1214, %v1060
        %v1217 = vmax.f32 %v1215, %v1066
        %v1218 = vmax.f32 %v1216, %v1070
        %v1219 = vmax.f32 %v1217, %v1076
        %v1220 = vmax.f32 %v1218, %v1080
        %v1221 = vmax.f32 %v1219, %v1086
        %v1222 = vmax.f32 %v1220, %v1090
        %v1223 = vmax.f32 %v1221, %v1096
        %v1224 = vmax.f32 %v1222, %v1100
        %v1225 = vmax.f32 %v1223, %v1106
        %v1226 = vmax.f32 %v1224, %v1110
        %v1227 = vmax.f32 %v1225, %v1116
        %v1228 = vmax.f32 %v1226, %v1120
        %v1229 = vmax.f32 %v1227, %v1126
        %v1230 = vmax.f32 %v1228, %v1130
        %v1231 = vmax.f32 %v1229, %v1136
        %v1232 = vmax.f32 %v1230, %v1140
        %v1233 = vmax.f32 %v1231, %v1146
        %v1234 = vmax.f32 %v1232, %v1150
        %v1235 = vmax.f32 %v1233, %v1156
        %v1236 = vmax.f32 %v1234, %v1160
        %v1237 = vmax.f32 %v1235, %v1166
        %v1238 = vmax.f32 %v1236, %v1170
        %v1239 = vmax.f32 %v1237, %v1238
        %v1240 = vrot.slane %v1239, 4
        %v1241 = vmax.f32 %v1239, %v1240
        %v1242 = vrot.slane %v1241, 2
        %v1243 = vmax.f32 %v1241, %v1242
        %v1244 = vrot.slane %v1243, 1
        %v1245 = vmax.f32 %v1243, %v1244
        %v1246 = vsub.f32 %v1014, %v1208
        %v1247 = vsub.f32 %v1016, %v1245
        %v1248 = vsub.f32 %v1018, %v1208
        %v1249 = vsub.f32 %v1020, %v1245
        %v1250 = vsub.f32 %v1024, %v1208
        %v1251 = vsub.f32 %v1026, %v1245
        %v1252 = vsub.f32 %v1028, %v1208
        %v1253 = vsub.f32 %v1030, %v1245
        %v1254 = vsub.f32 %v1034, %v1208
        %v1255 = vsub.f32 %v1036, %v1245
        %v1256 = vsub.f32 %v1038, %v1208
        %v1257 = vsub.f32 %v1040, %v1245
        %v1258 = vsub.f32 %v1044, %v1208
        %v1259 = vsub.f32 %v1046, %v1245
        %v1260 = vsub.f32 %v1048, %v1208
        %v1261 = vsub.f32 %v1050, %v1245
        %v1262 = vsub.f32 %v1054, %v1208
        %v1263 = vsub.f32 %v1056, %v1245
        %v1264 = vsub.f32 %v1058, %v1208
        %v1265 = vsub.f32 %v1060, %v1245
        %v1266 = vsub.f32 %v1064, %v1208
        %v1267 = vsub.f32 %v1066, %v1245
        %v1268 = vsub.f32 %v1068, %v1208
        %v1269 = vsub.f32 %v1070, %v1245
        %v1270 = vsub.f32 %v1074, %v1208
        %v1271 = vsub.f32 %v1076, %v1245
        %v1272 = vsub.f32 %v1078, %v1208
        %v1273 = vsub.f32 %v1080, %v1245
        %v1274 = vsub.f32 %v1084, %v1208
        %v1275 = vsub.f32 %v1086, %v1245
        %v1276 = vsub.f32 %v1088, %v1208
        %v1277 = vsub.f32 %v1090, %v1245
        %v1278 = vsub.f32 %v1094, %v1208
        %v1279 = vsub.f32 %v1096, %v1245
        %v1280 = vsub.f32 %v1098, %v1208
        %v1281 = vsub.f32 %v1100, %v1245
        %v1282 = vsub.f32 %v1104, %v1208
        %v1283 = vsub.f32 %v1106, %v1245
        %v1284 = vsub.f32 %v1108, %v1208
        %v1285 = vsub.f32 %v1110, %v1245
        %v1286 = vsub.f32 %v1114, %v1208
        %v1287 = vsub.f32 %v1116, %v1245
        %v1288 = vsub.f32 %v1118, %v1208
        %v1289 = vsub.f32 %v1120, %v1245
        %v1290 = vsub.f32 %v1124, %v1208
        %v1291 = vsub.f32 %v1126, %v1245
        %v1292 = vsub.f32 %v1128, %v1208
        %v1293 = vsub.f32 %v1130, %v1245
        %v1294 = vsub.f32 %v1134, %v1208
        %v1295 = vsub.f32 %v1136, %v1245
        %v1296 = vsub.f32 %v1138, %v1208
        %v1297 = vsub.f32 %v1140, %v1245
        %v1298 = vsub.f32 %v1144, %v1208
        %v1299 = vsub.f32 %v1146, %v1245
        %v1300 = vsub.f32 %v1148, %v1208
        %v1301 = vsub.f32 %v1150, %v1245
        %v1302 = vsub.f32 %v1154, %v1208
        %v1303 = vsub.f32 %v1156, %v1245
        %v1304 = vsub.f32 %v1158, %v1208
        %v1305 = vsub.f32 %v1160, %v1245
        %v1306 = vsub.f32 %v1164, %v1208
        %v1307 = vsub.f32 %v1166, %v1245
        %v1308 = vsub.f32 %v1168, %v1208
        %v1309 = vsub.f32 %v1170, %v1245
        %v1310 = vmul.f32 %v1246, 1.442695
        %v1311 = vpow.pop %v1310
        %v1312 = vmul.f32 %v1247, 1.442695
        %v1313 = vpow.pop %v1312
        %v1314 = vmul.f32 %v1248, 1.442695
        %v1315 = vpow.pop %v1314
        %v1316 = vmul.f32 %v1249, 1.442695
        %v1317 = vpow.pop %v1316
        %v1318 = vmul.f32 %v1250, 1.442695
        %v1319 = vpow.pop %v1318
        %v1320 = vmul.f32 %v1251, 1.442695
        %v1321 = vpow.pop %v1320
        %v1322 = vmul.f32 %v1252, 1.442695
        %v1323 = vpow.pop %v1322
        %v1324 = vmul.f32 %v1253, 1.442695
        %v1325 = vpow.pop %v1324
        %v1326 = vmul.f32 %v1254, 1.442695
        %v1327 = vpow.pop %v1326
        %v1328 = vmul.f32 %v1255, 1.442695
        %v1329 = vpow.pop %v1328
        %v1330 = vmul.f32 %v1256, 1.442695
        %v1331 = vpow.pop %v1330
        %v1332 = vmul.f32 %v1257, 1.442695
        %v1333 = vpow.pop %v1332
        %v1334 = vmul.f32 %v1258, 1.442695
        %v1335 = vpow.pop %v1334
        %v1336 = vmul.f32 %v1259, 1.442695
        %v1337 = vpow.pop %v1336
        %v1338 = vmul.f32 %v1260, 1.442695
        %v1339 = vpow.pop %v1338
        %v1340 = vmul.f32 %v1261, 1.442695
        %v1341 = vpow.pop %v1340
        %v1342 = vmul.f32 %v1262, 1.442695
        %v1343 = vpow.pop %v1342
        %v1344 = vmul.f32 %v1263, 1.442695
        %v1345 = vpow.pop %v1344
        %v1346 = vmul.f32 %v1264, 1.442695
        %v1347 = vpow.pop %v1346
        %v1348 = vmul.f32 %v1265, 1.442695
        %v1349 = vpow.pop %v1348
        %v1350 = vmul.f32 %v1266, 1.442695
        %v1351 = vpow.pop %v1350
        %v1352 = vmul.f32 %v1267, 1.442695
        %v1353 = vpow.pop %v1352
        %v1354 = vmul.f32 %v1268, 1.442695
        %v1355 = vpow.pop %v1354
        %v1356 = vmul.f32 %v1269, 1.442695
        %v1357 = vpow.pop %v1356
        %v1358 = vmul.f32 %v1270, 1.442695
        %v1359 = vpow.pop %v1358
        %v1360 = vmul.f32 %v1271, 1.442695
        %v1361 = vpow.pop %v1360
        %v1362 = vmul.f32 %v1272, 1.442695
        %v1363 = vpow.pop %v1362
        %v1364 = vmul.f32 %v1273, 1.442695
        %v1365 = vpow.pop %v1364
        %v1366 = vmul.f32 %v1274, 1.442695
        %v1367 = vpow.pop %v1366
        %v1368 = vmul.f32 %v1275, 1.442695
        %v1369 = vpow.pop %v1368
        %v1370 = vmul.f32 %v1276, 1.442695
        %v1371 = vpow.pop %v1370
        %v1372 = vmul.f32 %v1277, 1.442695
        %v1373 = vpow.pop %v1372
        %v1374 = vmul.f32 %v1278, 1.442695
        %v1375 = vpow.pop %v1374
        %v1376 = vmul.f32 %v1279, 1.442695
        %v1377 = vpow.pop %v1376
        %v1378 = vmul.f32 %v1280, 1.442695
        %v1379 = vpow.pop %v1378
        %v1380 = vmul.f32 %v1281, 1.442695
        %v1381 = vpow.pop %v1380
        %v1382 = vmul.f32 %v1282, 1.442695
        %v1383 = vpow.pop %v1382
        %v1384 = vmul.f32 %v1283, 1.442695
        %v1385 = vpow.pop %v1384
        %v1386 = vmul.f32 %v1284, 1.442695
        %v1387 = vpow.pop %v1386
        %v1388 = vmul.f32 %v1285, 1.442695
        %v1389 = vpow.pop %v1388
        %v1390 = vmul.f32 %v1286, 1.442695
        %v1391 = vpow.pop %v1390
        %v1392 = vmul.f32 %v1287, 1.442695
        %v1393 = vpow.pop %v1392
        %v1394 = vmul.f32 %v1288, 1.442695
        %v1395 = vpow.pop %v1394
        %v1396 = vmul.f32 %v1289, 1.442695
        %v1397 = vpow.pop %v1396
        %v1398 = vmul.f32 %v1290, 1.442695
        %v1399 = vpow.pop %v1398
        %v1400 = vmul.f32 %v1291, 1.442695
        %v1401 = vpow.pop %v1400
        %v1402 = vmul.f32 %v1292, 1.442695
        %v1403 = vpow.pop %v1402
        %v1404 = vmul.f32 %v1293, 1.442695
        %v1405 = vpow.pop %v1404
        %v1406 = vmul.f32 %v1294, 1.442695
        %v1407 = vpow.pop %v1406
        %v1408 = vmul.f32 %v1295, 1.442695
        %v1409 = vpow.pop %v1408
        %v1410 = vmul.f32 %v1296, 1.442695
        %v1411 = vpow.pop %v1410
        %v1412 = vmul.f32 %v1297, 1.442695
        %v1413 = vpow.pop %v1412
        %v1414 = vmul.f32 %v1298, 1.442695
        %v1415 = vpow.pop %v1414
        %v1416 = vmul.f32 %v1299, 1.442695
        %v1417 = vpow.pop %v1416
        %v1418 = vmul.f32 %v1300, 1.442695
        %v1419 = vpow.pop %v1418
        %v1420 = vmul.f32 %v1301, 1.442695
        %v1421 = vpow.pop %v1420
        %v1422 = vmul.f32 %v1302, 1.442695
        %v1423 = vpow.pop %v1422
        %v1424 = vmul.f32 %v1303, 1.442695
        %v1425 = vpow.pop %v1424
        %v1426 = vmul.f32 %v1304, 1.442695
        %v1427 = vpow.pop %v1426
        %v1428 = vmul.f32 %v1305, 1.442695
        %v1429 = vpow.pop %v1428
        %v1430 = vmul.f32 %v1306, 1.442695
        %v1431 = vpow.pop %v1430
        %v1432 = vmul.f32 %v1307, 1.442695
        %v1433 = vpow.pop %v1432
        %v1434 = vmul.f32 %v1308, 1.442695
        %v1435 = vpow.pop %v1434
        %v1436 = vmul.f32 %v1309, 1.442695
        %v1437 = vpow.pop %v1436
        %v1438 = vadd.f32 %v1311, %v1315
        %v1439 = vadd.f32 %v1438, %v1319
        %v1440 = vadd.f32 %v1439, %v1323
        %v1441 = vadd.f32 %v1440, %v1327
        %v1442 = vadd.f32 %v1441, %v1331
        %v1443 = vadd.f32 %v1442, %v1335
        %v1444 = vadd.f32 %v1443, %v1339
        %v1445 = vadd.f32 %v1444, %v1343
        %v1446 = vadd.f32 %v1445, %v1347
        %v1447 = vadd.f32 %v1446, %v1351
        %v1448 = vadd.f32 %v1447, %v1355
        %v1449 = vadd.f32 %v1448, %v1359
        %v1450 = vadd.f32 %v1449, %v1363
        %v1451 = vadd.f32 %v1450, %v1367
        %v1452 = vadd.f32 %v1451, %v1371
        %v1453 = vadd.f32 %v1452, %v1375
        %v1454 = vadd.f32 %v1453, %v1379
        %v1455 = vadd.f32 %v1454, %v1383
        %v1456 = vadd.f32 %v1455, %v1387
        %v1457 = vadd.f32 %v1456, %v1391
        %v1458 = vadd.f32 %v1457, %v1395
        %v1459 = vadd.f32 %v1458, %v1399
        %v1460 = vadd.f32 %v1459, %v1403
        %v1461 = vadd.f32 %v1460, %v1407
        %v1462 = vadd.f32 %v1461, %v1411
        %v1463 = vadd.f32 %v1462, %v1415
        %v1464 = vadd.f32 %v1463, %v1419
        %v1465 = vadd.f32 %v1464, %v1423
        %v1466 = vadd.f32 %v1465, %v1427
        %v1467 = vadd.f32 %v1466, %v1431
        %v1468 = vadd.f32 %v1467, %v1435
        %v1469 = vrot.slane %v1468, 4
        %v1470 = vadd.f32 %v1468, %v1469
        %v1471 = vrot.slane %v1470, 2
        %v1472 = vadd.f32 %v1470, %v1471
        %v1473 = vrot.slane %v1472, 1
        %v1474 = vadd.f32 %v1472, %v1473
        %v1475 = vadd.f32 %v1313, %v1317
        %v1476 = vadd.f32 %v1475, %v1321
        %v1477 = vadd.f32 %v1476, %v1325
        %v1478 = vadd.f32 %v1477, %v1329
        %v1479 = vadd.f32 %v1478, %v1333
        %v1480 = vadd.f32 %v1479, %v1337
        %v1481 = vadd.f32 %v1480, %v1341
        %v1482 = vadd.f32 %v1481, %v1345
        %v1483 = vadd.f32 %v1482, %v1349
        %v1484 = vadd.f32 %v1483, %v1353
        %v1485 = vadd.f32 %v1484, %v1357
        %v1486 = vadd.f32 %v1485, %v1361
        %v1487 = vadd.f32 %v1486, %v1365
        %v1488 = vadd.f32 %v1487, %v1369
        %v1489 = vadd.f32 %v1488, %v1373
        %v1490 = vadd.f32 %v1489, %v1377
        %v1491 = vadd.f32 %v1490, %v1381
        %v1492 = vadd.f32 %v1491, %v1385
        %v1493 = vadd.f32 %v1492, %v1389
        %v1494 = vadd.f32 %v1493, %v1393
        %v1495 = vadd.f32 %v1494, %v1397
        %v1496 = vadd.f32 %v1495, %v1401
        %v1497 = vadd.f32 %v1496, %v1405
        %v1498 = vadd.f32 %v1497, %v1409
        %v1499 = vadd.f32 %v1498, %v1413
        %v1500 = vadd.f32 %v1499, %v1417
        %v1501 = vadd.f32 %v1500, %v1421
        %v1502 = vadd.f32 %v1501, %v1425
        %v1503 = vadd.f32 %v1502, %v1429
        %v1504 = vadd.f32 %v1503, %v1433
        %v1505 = vadd.f32 %v1504, %v1437
        %v1506 = vrot.slane %v1505, 4
        %v1507 = vadd.f32 %v1505, %v1506
        %v1508 = vrot.slane %v1507, 2
        %v1509 = vadd.f32 %v1507, %v1508
        %v1510 = vrot.slane %v1509, 1
        %v1511 = vadd.f32 %v1509, %v1510
        %v1512 = vld [vmem:[#allocation3] sm:$0xff]
        %v1513 = vld [vmem:[#allocation3 + $0x8] sm:$0xff]
        %v1514 = vld [vmem:[#allocation3 + $0x10] sm:$0xff]
        %v1515 = vld [vmem:[#allocation3 + $0x18] sm:$0xff]
        %v1516 = vld [vmem:[#allocation3 + $0x20] sm:$0xff]
        %v1517 = vld [vmem:[#allocation3 + $0x28] sm:$0xff]
        %v1518 = vld [vmem:[#allocation3 + $0x30] sm:$0xff]
        %v1519 = vld [vmem:[#allocation3 + $0x38] sm:$0xff]
        %v1520 = vld [vmem:[#allocation3 + $0x40] sm:$0xff]
        %v1521 = vld [vmem:[#allocation3 + $0x48] sm:$0xff]
        %v1522 = vld [vmem:[#allocation3 + $0x50] sm:$0xff]
        %v1523 = vld [vmem:[#allocation3 + $0x58] sm:$0xff]
        %v1524 = vld [vmem:[#allocation3 + $0x60] sm:$0xff]
        %v1525 = vld [vmem:[#allocation3 + $0x68] sm:$0xff]
        %v1526 = vld [vmem:[#allocation3 + $0x70] sm:$0xff]
        %v1527 = vld [vmem:[#allocation3 + $0x78] sm:$0xff]
        %v1528 = vpack.c.bf16 %v1315, %v1311
        %v1529 = vpack.c.bf16 %v1317, %v1313
        %v1530 = vpack.c.bf16 %v1323, %v1319
        %v1531 = vpack.c.bf16 %v1325, %v1321
        %v1532 = vpack.c.bf16 %v1331, %v1327
        %v1533 = vpack.c.bf16 %v1333, %v1329
        %v1534 = vpack.c.bf16 %v1339, %v1335
        %v1535 = vpack.c.bf16 %v1341, %v1337
        %v1536 = vpack.c.bf16 %v1347, %v1343
        %v1537 = vpack.c.bf16 %v1349, %v1345
        %v1538 = vpack.c.bf16 %v1355, %v1351
        %v1539 = vpack.c.bf16 %v1357, %v1353
        %v1540 = vpack.c.bf16 %v1363, %v1359
        %v1541 = vpack.c.bf16 %v1365, %v1361
        %v1542 = vpack.c.bf16 %v1371, %v1367
        %v1543 = vpack.c.bf16 %v1373, %v1369
        %v1544 = vpack.c.bf16 %v1379, %v1375
        %v1545 = vpack.c.bf16 %v1381, %v1377
        %v1546 = vpack.c.bf16 %v1387, %v1383
        %v1547 = vpack.c.bf16 %v1389, %v1385
        %v1548 = vpack.c.bf16 %v1395, %v1391
        %v1549 = vpack.c.bf16 %v1397, %v1393
        %v1550 = vpack.c.bf16 %v1403, %v1399
        %v1551 = vpack.c.bf16 %v1405, %v1401
        %v1552 = vpack.c.bf16 %v1411, %v1407
        %v1553 = vpack.c.bf16 %v1413, %v1409
        %v1554 = vpack.c.bf16 %v1419, %v1415
        %v1555 = vpack.c.bf16 %v1421, %v1417
        %v1556 = vpack.c.bf16 %v1427, %v1423
        %v1557 = vpack.c.bf16 %v1429, %v1425
        %v1558 = vpack.c.bf16 %v1435, %v1431
        %v1559 = vpack.c.bf16 %v1437, %v1433
        %v1576 = vunpack.c.l.b16 %v1512
        %v1577 = vunpack.c.h.b16 %v1512
        %v1578 = vunpack.c.l.b16 %v1513
        %v1579 = vunpack.c.h.b16 %v1513
        %v1580 = vunpack.c.l.b16 %v1514
        %v1581 = vunpack.c.h.b16 %v1514
        %v1582 = vunpack.c.l.b16 %v1515
        %v1583 = vunpack.c.h.b16 %v1515
        %v1584 = vunpack.c.l.b16 %v1516
        %v1585 = vunpack.c.h.b16 %v1516
        %v1586 = vunpack.c.l.b16 %v1517
        %v1587 = vunpack.c.h.b16 %v1517
        %v1588 = vunpack.c.l.b16 %v1518
        %v1589 = vunpack.c.h.b16 %v1518
        %v1590 = vunpack.c.l.b16 %v1519
        %v1591 = vunpack.c.h.b16 %v1519
        %v1592 = vunpack.c.l.b16 %v1520
        %v1593 = vunpack.c.h.b16 %v1520
        %v1594 = vunpack.c.l.b16 %v1521
        %v1595 = vunpack.c.h.b16 %v1521
        %v1596 = vunpack.c.l.b16 %v1522
        %v1597 = vunpack.c.h.b16 %v1522
        %v1598 = vunpack.c.l.b16 %v1523
        %v1599 = vunpack.c.h.b16 %v1523
        %v1600 = vunpack.c.l.b16 %v1524
        %v1601 = vunpack.c.h.b16 %v1524
        %v1602 = vunpack.c.l.b16 %v1525
        %v1603 = vunpack.c.h.b16 %v1525
        %v1604 = vunpack.c.l.b16 %v1526
        %v1605 = vunpack.c.h.b16 %v1526
        %v1606 = vunpack.c.l.b16 %v1527
        %v1607 = vunpack.c.h.b16 %v1527
        %v1608 = vpack.c.b16 %v1578, %v1576
        %v1609 = vpack.c.b16 %v1579, %v1577
        %v1610 = vpack.c.b16 %v1582, %v1580
        %v1611 = vpack.c.b16 %v1583, %v1581
        %v1612 = vpack.c.b16 %v1586, %v1584
        %v1613 = vpack.c.b16 %v1587, %v1585
        %v1614 = vpack.c.b16 %v1590, %v1588
        %v1615 = vpack.c.b16 %v1591, %v1589
        %v1616 = vpack.c.b16 %v1594, %v1592
        %v1617 = vpack.c.b16 %v1595, %v1593
        %v1618 = vpack.c.b16 %v1598, %v1596
        %v1619 = vpack.c.b16 %v1599, %v1597
        %v1620 = vpack.c.b16 %v1602, %v1600
        %v1621 = vpack.c.b16 %v1603, %v1601
        %v1622 = vpack.c.b16 %v1606, %v1604
        %v1623 = vpack.c.b16 %v1607, %v1605
        %1640 = vmatprep.subr.bf16.mxu0 %v1543
        %1641 = vmatpush1.bf16.msra.mxu0 %v1542
        %1642 = vmatprep.subr.bf16.mxu0 %v1541
        %1643 = vmatpush1.bf16.msra.mxu0 %v1540
        %1644 = vmatprep.subr.bf16.mxu0 %v1539
        %1645 = vmatpush1.bf16.msra.mxu0 %v1538
        %1646 = vmatprep.subr.bf16.mxu0 %v1537
        %1647 = vmatpush1.bf16.msra.mxu0 %v1536
        %1648 = vmatprep.subr.bf16.mxu0 %v1535
        %1649 = vmatpush1.bf16.msra.mxu0 %v1534
        %1650 = vmatprep.subr.bf16.mxu0 %v1533
        %1651 = vmatpush1.bf16.msra.mxu0 %v1532
        %1652 = vmatprep.subr.bf16.mxu0 %v1531
        %1653 = vmatpush1.bf16.msra.mxu0 %v1530
        %1654 = vmatprep.subr.bf16.mxu0 %v1529
        %1655 = vmatpush1.bf16.msra.mxu0 %v1528
        %1656 = vmatprep.subr.bf16.mxu0 %v1559
        %1657 = vmatpush2.bf16.msra.mxu0 %v1558
        %1658 = vmatprep.subr.bf16.mxu0 %v1557
        %1659 = vmatpush2.bf16.msra.mxu0 %v1556
        %1660 = vmatprep.subr.bf16.mxu0 %v1555
        %1661 = vmatpush2.bf16.msra.mxu0 %v1554
        %1662 = vmatprep.subr.bf16.mxu0 %v1553
        %1663 = vmatpush2.bf16.msra.mxu0 %v1552
        %1664 = vmatprep.subr.bf16.mxu0 %v1551
        %1665 = vmatpush2.bf16.msra.mxu0 %v1550
        %1666 = vmatprep.subr.bf16.mxu0 %v1549
        %1667 = vmatpush2.bf16.msra.mxu0 %v1548
        %1668 = vmatprep.subr.bf16.mxu0 %v1547
        %1669 = vmatpush2.bf16.msra.mxu0 %v1546
        %1670 = vmatprep.subr.bf16.mxu0 %v1545
        %1671 = vmatpush2.bf16.msra.mxu0 %v1544
        %1672 = vmatprep.mubr.bf16.mxu0 %v1609
        %1673 = vmatmul.mubr.bf16.gmra.mxu0 %v1608
        %v1674 = vpop.f32.mrf.mxu0
        %v1675 = vadd.f32 0.0, %v1674
        %v1676 = vpop.f32.mrf.mxu0
        %v1677 = vadd.f32 0.0, %v1676
        %v1678 = vpop.f32.mrf.mxu0
        %v1679 = vadd.f32 0.0, %v1678
        %v1680 = vpop.f32.mrf.mxu0
        %v1681 = vadd.f32 0.0, %v1680
        %1682 = vmatprep.mubr.bf16.mxu0 %v1611
        %1683 = vmatmul.mubr.bf16.gmra.mxu0 %v1610
        %v1684 = vpop.f32.mrf.mxu0
        %v1685 = vadd.f32 0.0, %v1684
        %v1686 = vpop.f32.mrf.mxu0
        %v1687 = vadd.f32 0.0, %v1686
        %v1688 = vpop.f32.mrf.mxu0
        %v1689 = vadd.f32 0.0, %v1688
        %v1690 = vpop.f32.mrf.mxu0
        %v1691 = vadd.f32 0.0, %v1690
        %1692 = vmatprep.mubr.bf16.mxu0 %v1613
        %1693 = vmatmul.mubr.bf16.gmra.mxu0 %v1612
        %v1694 = vpop.f32.mrf.mxu0
        %v1695 = vadd.f32 0.0, %v1694
        %v1696 = vpop.f32.mrf.mxu0
        %v1697 = vadd.f32 0.0, %v1696
        %v1698 = vpop.f32.mrf.mxu0
        %v1699 = vadd.f32 0.0, %v1698
        %v1700 = vpop.f32.mrf.mxu0
        %v1701 = vadd.f32 0.0, %v1700
        %1702 = vmatprep.mubr.bf16.mxu0 %v1615
        %1703 = vmatmul.mubr.bf16.gmra.mxu0 %v1614
        %v1704 = vpop.f32.mrf.mxu0
        %v1705 = vadd.f32 0.0, %v1704
        %v1706 = vpop.f32.mrf.mxu0
        %v1707 = vadd.f32 0.0, %v1706
        %v1708 = vpop.f32.mrf.mxu0
        %v1709 = vadd.f32 0.0, %v1708
        %v1710 = vpop.f32.mrf.mxu0
        %v1711 = vadd.f32 0.0, %v1710
        %1712 = vmatprep.mubr.bf16.mxu0 %v1617
        %1713 = vmatmul.mubr.bf16.gmra.mxu0 %v1616
        %v1714 = vpop.f32.mrf.mxu0
        %v1715 = vadd.f32 0.0, %v1714
        %v1716 = vpop.f32.mrf.mxu0
        %v1717 = vadd.f32 0.0, %v1716
        %v1718 = vpop.f32.mrf.mxu0
        %v1719 = vadd.f32 0.0, %v1718
        %v1720 = vpop.f32.mrf.mxu0
        %v1721 = vadd.f32 0.0, %v1720
        %1722 = vmatprep.mubr.bf16.mxu0 %v1619
        %1723 = vmatmul.mubr.bf16.gmra.mxu0 %v1618
        %v1724 = vpop.f32.mrf.mxu0
        %v1725 = vadd.f32 0.0, %v1724
        %v1726 = vpop.f32.mrf.mxu0
        %v1727 = vadd.f32 0.0, %v1726
        %v1728 = vpop.f32.mrf.mxu0
        %v1729 = vadd.f32 0.0, %v1728
        %v1730 = vpop.f32.mrf.mxu0
        %v1731 = vadd.f32 0.0, %v1730
        %1732 = vmatprep.mubr.bf16.mxu0 %v1621
        %1733 = vmatmul.mubr.bf16.gmra.mxu0 %v1620
        %v1734 = vpop.f32.mrf.mxu0
        %v1735 = vadd.f32 0.0, %v1734
        %v1736 = vpop.f32.mrf.mxu0
        %v1737 = vadd.f32 0.0, %v1736
        %v1738 = vpop.f32.mrf.mxu0
        %v1739 = vadd.f32 0.0, %v1738
        %v1740 = vpop.f32.mrf.mxu0
        %v1741 = vadd.f32 0.0, %v1740
        %1742 = vmatprep.mubr.bf16.mxu0 %v1623
        %1743 = vmatmul.mubr.bf16.gmra.mxu0 %v1622
        %v1744 = vpop.f32.mrf.mxu0
        %v1745 = vadd.f32 0.0, %v1744
        %v1746 = vpop.f32.mrf.mxu0
        %v1747 = vadd.f32 0.0, %v1746
        %v1748 = vpop.f32.mrf.mxu0
        %v1749 = vadd.f32 0.0, %v1748
        %v1750 = vpop.f32.mrf.mxu0
        %v1751 = vadd.f32 0.0, %v1750
        %1752 = vdwg.mxu0
        %v1753 = vrcp.pop %v1474
        %v1754 = vrcp.pop %v1511
        %v1755 = vmul.f32 %v1675, %v1753
        %v1756 = vmul.f32 %v1677, %v1754
        %v1757 = vmul.f32 %v1679, %v1753
        %v1758 = vmul.f32 %v1681, %v1754
        %v1759 = vmul.f32 %v1685, %v1753
        %v1760 = vmul.f32 %v1687, %v1754
        %v1761 = vmul.f32 %v1689, %v1753
        %v1762 = vmul.f32 %v1691, %v1754
        %v1763 = vmul.f32 %v1695, %v1753
        %v1764 = vmul.f32 %v1697, %v1754
        %v1765 = vmul.f32 %v1699, %v1753
        %v1766 = vmul.f32 %v1701, %v1754
        %v1767 = vmul.f32 %v1705, %v1753
        %v1768 = vmul.f32 %v1707, %v1754
        %v1769 = vmul.f32 %v1709, %v1753
        %v1770 = vmul.f32 %v1711, %v1754
        %v1771 = vmul.f32 %v1715, %v1753
        %v1772 = vmul.f32 %v1717, %v1754
        %v1773 = vmul.f32 %v1719, %v1753
        %v1774 = vmul.f32 %v1721, %v1754
        %v1775 = vmul.f32 %v1725, %v1753
        %v1776 = vmul.f32 %v1727, %v1754
        %v1777 = vmul.f32 %v1729, %v1753
        %v1778 = vmul.f32 %v1731, %v1754
        %v1779 = vmul.f32 %v1735, %v1753
        %v1780 = vmul.f32 %v1737, %v1754
        %v1781 = vmul.f32 %v1739, %v1753
        %v1782 = vmul.f32 %v1741, %v1754
        %v1783 = vmul.f32 %v1745, %v1753
        %v1784 = vmul.f32 %v1747, %v1754
        %v1785 = vmul.f32 %v1749, %v1753
        %v1786 = vmul.f32 %v1751, %v1754
        %s1787 = sld [smem:[#allocation4]]
        %v1788 = vstv %s1787
        %v1789 = vmul.f32 %v1788, %v1755
        %v1790 = vmul.f32 %v1788, %v1756
        %v1791 = vmul.f32 %v1788, %v1757
        %v1792 = vmul.f32 %v1788, %v1758
        %v1793 = vmul.f32 %v1788, %v1759
        %v1794 = vmul.f32 %v1788, %v1760
        %v1795 = vmul.f32 %v1788, %v1761
        %v1796 = vmul.f32 %v1788, %v1762
        %v1797 = vmul.f32 %v1788, %v1763
        %v1798 = vmul.f32 %v1788, %v1764
        %v1799 = vmul.f32 %v1788, %v1765
        %v1800 = vmul.f32 %v1788, %v1766
        %v1801 = vmul.f32 %v1788, %v1767
        %v1802 = vmul.f32 %v1788, %v1768
        %v1803 = vmul.f32 %v1788, %v1769
        %v1804 = vmul.f32 %v1788, %v1770
        %v1805 = vmul.f32 %v1788, %v1771
        %v1806 = vmul.f32 %v1788, %v1772
        %v1807 = vmul.f32 %v1788, %v1773
        %v1808 = vmul.f32 %v1788, %v1774
        %v1809 = vmul.f32 %v1788, %v1775
        %v1810 = vmul.f32 %v1788, %v1776
        %v1811 = vmul.f32 %v1788, %v1777
        %v1812 = vmul.f32 %v1788, %v1778
        %v1813 = vmul.f32 %v1788, %v1779
        %v1814 = vmul.f32 %v1788, %v1780
        %v1815 = vmul.f32 %v1788, %v1781
        %v1816 = vmul.f32 %v1788, %v1782
        %v1817 = vmul.f32 %v1788, %v1783
        %v1818 = vmul.f32 %v1788, %v1784
        %v1819 = vmul.f32 %v1788, %v1785
        %v1820 = vmul.f32 %v1788, %v1786
        %v1821 = vadd.f32 %v1789, %v773
        %v1822 = vadd.f32 %v1790, %v774
        %v1823 = vadd.f32 %v1791, %v775
        %v1824 = vadd.f32 %v1792, %v776
        %v1825 = vadd.f32 %v1793, %v777
        %v1826 = vadd.f32 %v1794, %v778
        %v1827 = vadd.f32 %v1795, %v779
        %v1828 = vadd.f32 %v1796, %v780
        %v1829 = vadd.f32 %v1797, %v781
        %v1830 = vadd.f32 %v1798, %v782
        %v1831 = vadd.f32 %v1799, %v783
        %v1832 = vadd.f32 %v1800, %v784
        %v1833 = vadd.f32 %v1801, %v785
        %v1834 = vadd.f32 %v1802, %v786
        %v1835 = vadd.f32 %v1803, %v787
        %v1836 = vadd.f32 %v1804, %v788
        %v1837 = vadd.f32 %v1805, %v789
        %v1838 = vadd.f32 %v1806, %v790
        %v1839 = vadd.f32 %v1807, %v791
        %v1840 = vadd.f32 %v1808, %v792
        %v1841 = vadd.f32 %v1809, %v793
        %v1842 = vadd.f32 %v1810, %v794
        %v1843 = vadd.f32 %v1811, %v795
        %v1844 = vadd.f32 %v1812, %v796
        %v1845 = vadd.f32 %v1813, %v797
        %v1846 = vadd.f32 %v1814, %v798
        %v1847 = vadd.f32 %v1815, %v799
        %v1848 = vadd.f32 %v1816, %v800
        %v1849 = vadd.f32 %v1817, %v801
        %v1850 = vadd.f32 %v1818, %v802
        %v1851 = vadd.f32 %v1819, %v803
        %v1852 = vadd.f32 %v1820, %v804
        %1853 = vst [vmem:[%s284] sm:$0xff] %v1821
        %1854 = vst [vmem:[%s284 + $0x8] sm:$0xff] %v1822
        %1855 = vst [vmem:[%s284 + $0x10] sm:$0xff] %v1823
        %1856 = vst [vmem:[%s284 + $0x18] sm:$0xff] %v1824
        %1857 = vst [vmem:[%s284 + $0x20] sm:$0xff] %v1825
        %1858 = vst [vmem:[%s284 + $0x28] sm:$0xff] %v1826
        %1859 = vst [vmem:[%s284 + $0x30] sm:$0xff] %v1827
        %1860 = vst [vmem:[%s284 + $0x38] sm:$0xff] %v1828
        %1861 = vst [vmem:[%s284 + $0x40] sm:$0xff] %v1829
        %1862 = vst [vmem:[%s284 + $0x48] sm:$0xff] %v1830
        %1863 = vst [vmem:[%s284 + $0x50] sm:$0xff] %v1831
        %1864 = vst [vmem:[%s284 + $0x58] sm:$0xff] %v1832
        %1865 = vst [vmem:[%s284 + $0x60] sm:$0xff] %v1833
        %1866 = vst [vmem:[%s284 + $0x68] sm:$0xff] %v1834
        %1867 = vst [vmem:[%s284 + $0x70] sm:$0xff] %v1835
        %1868 = vst [vmem:[%s284 + $0x78] sm:$0xff] %v1836
        %1869 = vst [vmem:[%s284 + $0x80] sm:$0xff] %v1837
        %1870 = vst [vmem:[%s284 + $0x88] sm:$0xff] %v1838
        %1871 = vst [vmem:[%s284 + $0x90] sm:$0xff] %v1839
        %1872 = vst [vmem:[%s284 + $0x98] sm:$0xff] %v1840
        %1873 = vst [vmem:[%s284 + $0xa0] sm:$0xff] %v1841
        %1874 = vst [vmem:[%s284 + $0xa8] sm:$0xff] %v1842
        %1875 = vst [vmem:[%s284 + $0xb0] sm:$0xff] %v1843
        %1876 = vst [vmem:[%s284 + $0xb8] sm:$0xff] %v1844
        %1877 = vst [vmem:[%s284 + $0xc0] sm:$0xff] %v1845
        %1878 = vst [vmem:[%s284 + $0xc8] sm:$0xff] %v1846
        %1879 = vst [vmem:[%s284 + $0xd0] sm:$0xff] %v1847
        %1880 = vst [vmem:[%s284 + $0xd8] sm:$0xff] %v1848
        %1881 = vst [vmem:[%s284 + $0xe0] sm:$0xff] %v1849
        %1882 = vst [vmem:[%s284 + $0xe8] sm:$0xff] %v1850
        %1883 = vst [vmem:[%s284 + $0xf0] sm:$0xff] %v1851
        %1884 = vst [vmem:[%s284 + $0xf8] sm:$0xff] %v1852
        %s1885 = sand.u32 %s177, 1
        %s1886 = scalar_lea.sflag [#allocation7], %s1885
        %s1887 = sand.u32 %s177, 1
        %s1888 = smul.addr %s1887, 256
        %s1889 = scalar_lea.vmem [#allocation8], %s1888
        // Predicated region
        $region53: #{tpu_custom_call.1} parent=43 // pred_check
          %p1890 = pneg %p187
        $region54: #{tpu_custom_call.1} parent=43 // pred_check_branch
          %1892 = sbr.rel (%p1890) target = $region56
        $region55: #{tpu_custom_call.1} parent=43 // pred_region
          %s1893 = smul.u32 2, %s29
          %s1895 = ssub.s32 4096, 4096
          %1896 = vsyncadd %s1886, %s1895
          %s1897 = smul.addr %s28, 32
          %s1898 = sadd.s32 %s1893, %s1897
          %s1899 = smul.addr %s1898, 128
          %s1900 = scalar_lea.hbm %s6, %s1899
          %s1901 = sshll.u32 %s1889, 4
          %s1902 = int_to_ptr.vmem [resolvable:$true] %s1901
          %1907 = dma.vmem_to_hbm [thread:$0]  %s1902, 4096, %s1900, %s1886, 256, 256, 16
        $region56: #{tpu_custom_call.1} parent=43 // pred_fallthru
          _
      $region44: #{tpu_custom_call.1} parent=5 // pred_fallthru
        _
      %p1908 = scmp.le.s32.totalorder 2, %s19
      // Predicated region
      $region57: #{tpu_custom_call.1} parent=5 // pred_check
        %p1909 = pneg %p1908
      $region58: #{tpu_custom_call.1} parent=5 // pred_check_branch
        %1911 = sbr.rel (%p1909) target = $region60
      $region59: #{tpu_custom_call.1} parent=5 // pred_region
        %s1912 = ssub.s32 %s19, 2
        // Predicated region
        $region61: #{tpu_custom_call.1} parent=59 // pred_check
          %p1913 = pneg %p193
        $region62: #{tpu_custom_call.1} parent=59 // pred_check_branch
          %1915 = sbr.rel (%p1913) target = $region64
        $region63: #{tpu_custom_call.1} parent=59 // pred_region
          %s1916 = sand.u32 %s178, 1
          %s1917 = scalar_lea.sflag [#allocation7], %s1916
          %s1918 = sand.u32 %s178, 1
          %s1919 = smul.addr %s1918, 256
          %s1920 = scalar_lea.vmem [#allocation8], %s1919
          %1921 = dma.done %s1917, 4096
        $region64: #{tpu_custom_call.1} parent=59 // pred_fallthru
          _
      $region60: #{tpu_custom_call.1} parent=5 // pred_fallthru
        _
    $region6: #{tpu_custom_call.1} parent=1 // loop_footer
      %s23 = sadd.s32 1, %s19
    $region7: #{tpu_custom_call.1} parent=1 // loop_footer_branch
      %18 = sbr.rel target = $region3
    $region8: #{tpu_custom_call.1} parent=1 // loop_exit
      _
    %1922 = vsyncpa [#allocation6], 1
    %s1923 = scalar_lea.sflag [#allocation6], 1
    %1924 = vsyncpa %s1923, 1
    %1925 = vsyncpa [#allocation7], 1
    %s1926 = scalar_lea.sflag [#allocation7], 1
    %1927 = vsyncpa %s1926, 1

</llo_original>
